<compile_context>
chip_gen: v7x
topology: tpu7x:2x2x1
jax: 0.10.0
libtpu: 0.0.40
codegen_flags: <defaults>
</compile_context>

<pallas_src>
import functools
import math

import numpy as np
import jax
import jax.numpy as jnp
from jax import lax
from jax.experimental import pallas as pl
from jax.experimental.pallas import tpu as pltpu


def _round_up(v, m):
    return ((v + m - 1) // m) * m


# ----------------------------------------------------------------------------
# Fused boosting-loop Pallas kernel (grid axis = tree index, sequential)
# ----------------------------------------------------------------------------
def _dboostree_fused_kernel(x_ref, l1x_ref, l1bo_ref, l1b_ref, embw_ref,
                            embb_ref, prew_ref, preb_ref, nodew_ref,
                            lvw_ref, lvb_ref, outw_ref, outb_ref, sel_ref,
                            srt_ref, slt_ref, rep_ref, bsum_ref,
                            o_ref, cum_ref, boost_ref,
                            *, depth, batch, inv_bme, use_bf16):
    t = pl.program_id(0)

    @pl.when(t == 0)
    def _():
        cum_ref[...] = jnp.zeros_like(cum_ref)
        boost_ref[...] = jnp.zeros_like(boost_ref)

    def mm(a, b, bf16_ok=True):
        # bf16 only for the large matmuls; routing chain stays f32.
        if use_bf16 and bf16_ok:
            a = a.astype(jnp.bfloat16)
            b = b.astype(jnp.bfloat16)
        return jnp.dot(a, b, preferred_element_type=jnp.float32,
                       precision=lax.Precision.DEFAULT)

    x = x_ref[...]                                                   # (B_pad, F_pad)

    # DTREE.l1 (original features + boosted feature columns) + ReLU
    h = mm(x, l1x_ref[0]) + mm(boost_ref[...], l1bo_ref[0]) + l1b_ref[0]
    h = jnp.maximum(h, 0.0)                                          # (B_pad, E)
    # DTREE.embed_layer: depth x (Linear(E,E) + ReLU)
    for d in range(depth):
        h = jnp.maximum(mm(h, embw_ref[0, d]) + embb_ref[0, d], 0.0)
    # DTree.pre_network: Linear(E, E+1) + ReLU  (routing chain -> keep f32)
    z = jnp.maximum(mm(h, prew_ref[0], bf16_ok=False) + preb_ref[0], 0.0)

    # F.normalize(z, dim=1) == z * rsqrt(max(||z||^2, eps^2))
    eps = 1e-12
    zn = z * lax.rsqrt(jnp.maximum(jnp.sum(z * z, axis=1, keepdims=True),
                                   eps * eps))
    # Node weight columns are pre-normalized host-side -> cosine similarities.
    right = mm(zn, nodew_ref[0], bf16_ok=False)                      # (B_pad, N)
    right_dist = (1.0 - right) * 0.5
    left_dist = 1.0 - right_dist

    ceps = 0.01
    log_r = jnp.log(jnp.clip(right_dist, ceps, 1.0 - ceps))
    log_l = jnp.log(jnp.clip(left_dist, ceps, 1.0 - ceps))
    # Per-leaf path log-prob via static 0/1 routing matrices.
    leaves_log = (mm(log_r, srt_ref[...], bf16_ok=False)
                  + mm(log_l, slt_ref[...], bf16_ok=False))          # (B_pad, L)
    scaled = jnp.exp(leaves_log)

    # Batch-mean entropy factor, computed in-kernel; padded rows masked out.
    ent = -jnp.sum(scaled * leaves_log, axis=1, keepdims=True)       # (B_pad, 1)
    rows = lax.broadcasted_iota(jnp.int32, ent.shape, 0)
    ent_sum = jnp.sum(jnp.where(rows < batch, ent, 0.0))
    # TODO(synk): torch.randn(1) replaced with deterministic 0.0.
    factor = 1.0 + ent_sum * inv_bme

    # All leaf heads as ONE lane-dense matmul; leaf-probability weighting via a
    # static replication matrix; leaf sum via a block-sum matrix; then the
    # padded out_layer matmul.  Only the final store is (B_pad, 128).
    res = mm(z, lvw_ref[0]) + lvb_ref[0]                             # (B_pad, L*E)
    weighted = mm(scaled, rep_ref[...], bf16_ok=False) * res         # (B_pad, L*E)
    mix = mm(weighted, bsum_ref[...])                                # (B_pad, E)
    y = mm(mix, outw_ref[0], bf16_ok=False)                          # (B_pad, OUT_PAD)
    out_t = factor * y + outb_ref[0]                                 # (B_pad, OUT_PAD)

    # Cumulative (boosted) output, kept resident across trees.
    cum_ref[...] = cum_ref[...] + out_t
    o_ref[0] = cum_ref[...]

    # Scatter this tree's output into its boosted-feature column via a one-hot
    # matmul (no dynamic lane-offset stores).
    boost_ref[...] = boost_ref[...] + mm(out_t, sel_ref[0], bf16_ok=False)


def dboostree_forward(x, params, *, num_trees, depth, out_dim, flat_dim, f_pad,
                      out_pad, boost_dim, b_pad, max_entropy, use_bf16=False):
    B = x.shape[0]
    xb = x.reshape(B, -1).astype(jnp.float32)
    x_pad = jnp.zeros((b_pad, f_pad), jnp.float32).at[:B, :flat_dim].set(xb)

    def tree_spec(shape):
        nd = len(shape)
        return pl.BlockSpec((1,) + tuple(shape[1:]),
                            lambda t, _nd=nd: (t,) + (0,) * (_nd - 1))

    def const_spec(shape):
        nd = len(shape)
        return pl.BlockSpec(tuple(shape), lambda t, _nd=nd: (0,) * _nd)

    weights = [params["l1x_w"], params["l1bo_w"], params["l1_b"],
               params["emb_w"], params["emb_b"],
               params["pre_w"], params["pre_b"], params["node_wn"],
               params["lv_w"], params["lv_b"],
               params["out_w"], params["out_b"], params["sel"]]
    const_ws = [params["sr_t"], params["sl_t"], params["rep"], params["bsum"]]

    in_specs = ([pl.BlockSpec((b_pad, f_pad), lambda t: (0, 0))]
                + [tree_spec(w.shape) for w in weights]
                + [const_spec(w.shape) for w in const_ws])

    inv_bme = 1.0 / (B * max_entropy)
    kernel = functools.partial(_dboostree_fused_kernel, depth=depth, batch=B,
                               inv_bme=inv_bme, use_bf16=use_bf16)

    slab = pl.pallas_call(
        kernel,
        out_shape=jax.ShapeDtypeStruct((num_trees, b_pad, out_pad), jnp.float32),
        grid=(num_trees,),
        in_specs=in_specs,
        out_specs=pl.BlockSpec((1, b_pad, out_pad), lambda t: (t, 0, 0)),
        scratch_shapes=[pltpu.VMEM((b_pad, out_pad), jnp.float32),   # cumsum acc
                        pltpu.VMEM((b_pad, boost_dim), jnp.float32)],  # boost cols
        compiler_params=pltpu.CompilerParams(
            dimension_semantics=("arbitrary",),
            vmem_limit_bytes=32 * 1024 * 1024),
    )(x_pad, *weights, *const_ws)

    return slab[:, :B, :out_dim]


# ----------------------------------------------------------------------------
# Host-side constants / parameters (glue)
# ----------------------------------------------------------------------------
def build_route_matrices(depth):
    """Replicates DTree.__init__ leaf routing tables as 0/1 selection matrices."""
    num_nodes = 2 ** (depth + 1) - 1
    num_leaves = 2 ** (depth + 1)
    s_right = np.zeros((num_leaves, num_nodes), np.float32)  # branch_side == 0
    s_left = np.zeros((num_leaves, num_nodes), np.float32)   # branch_side == 1
    for i in range(num_leaves):
        temp, temp_sides = [], []
        leaf_idx = num_nodes + i
        for _ in range(depth):
            parent_idx = (leaf_idx - 1) // 2
            temp.append(parent_idx)
            temp_sides.append(1 if (leaf_idx - 1) % 2 == 0 else 0)
            leaf_idx = parent_idx
        temp_sides.append(1 if (leaf_idx - 1) % 2 == 0 else 0)
        temp.append(0)
        for node, side in zip(temp[::-1], temp_sides[::-1]):
            if side == 0:
                s_right[i, node] += 1.0
            else:
                s_left[i, node] += 1.0
    return s_right, s_left


def _init_linear(key, d_in, d_out):
    kw, kb = jax.random.split(key)
    bound = 1.0 / math.sqrt(d_in)
    w_t = jax.random.uniform(kw, (d_in, d_out), jnp.float32, -bound, bound)
    b = jax.random.uniform(kb, (d_out,), jnp.float32, -bound, bound)
    return w_t, b


def init_tree_params(key, in_dim, embed_dim, depth, out_dim):
    num_nodes = 2 ** (depth + 1) - 1
    num_leaves = 2 ** (depth + 1)
    pre_out = embed_dim + 1
    keys = jax.random.split(key, 5 + depth)
    p = {}
    p["l1"] = _init_linear(keys[0], in_dim, embed_dim)                       # DTREE.l1
    p["embed"] = [_init_linear(keys[1 + i], embed_dim, embed_dim)            # DTREE.embed_layer
                  for i in range(depth)]
    p["pre"] = _init_linear(keys[1 + depth], embed_dim, pre_out)             # DTree.pre_network
    p["node_wt"] = jax.random.normal(keys[2 + depth], (pre_out, num_nodes),  # DTreeNodes.right_w^T
                                     jnp.float32)
    p["leaves"] = _init_linear(keys[3 + depth], pre_out,
                               embed_dim * num_leaves)                       # leaves_models
    p["out"] = _init_linear(keys[4 + depth], embed_dim, out_dim)             # DTREE.out_layer
    return p


def stack_tree_params(raw_trees, sr, sl, *, flat_dim, f_pad, embed_dim, depth,
                      out_dim, out_pad, boost_dim):
    """Pads / pre-normalizes / stacks everything the fused kernel needs."""
    num_leaves = 2 ** (depth + 1)
    E = embed_dim

    l1x, l1bo, l1b = [], [], []
    embw, embb, prew, preb, nodewn = [], [], [], [], []
    lvw, lvb, outw, outb, sel = [], [], [], [], []

    for i, raw in enumerate(raw_trees):
        w = np.asarray(raw["l1"][0])                     # (flat_dim + i*out_dim, E)
        b = np.asarray(raw["l1"][1])
        wx = np.zeros((f_pad, E), np.float32)
        wx[:flat_dim] = w[:flat_dim]
        wbo = np.zeros((boost_dim, E), np.float32)
        if i > 0:
            wbo[:i * out_dim] = w[flat_dim:]
        l1x.append(wx)
        l1bo.append(wbo)
        l1b.append(b.reshape(1, E))

        embw.append(np.stack([np.asarray(wd) for (wd, _) in raw["embed"]], 0))
        embb.append(np.stack([np.asarray(bd).reshape(1, E)
                              for (_, bd) in raw["embed"]], 0))

        pw, pb = raw["pre"]
        prew.append(np.asarray(pw))
        preb.append(np.asarray(pb).reshape(1, -1))

        nwt = np.asarray(raw["node_wt"])                 # (D, N)
        nrm = np.maximum(np.sqrt((nwt * nwt).sum(0, keepdims=True)), 1e-12)
        nodewn.append(nwt / nrm)

        lw, lb = raw["leaves"]
        lvw.append(np.asarray(lw))
        lvb.append(np.asarray(lb).reshape(1, -1))

        ow, ob = raw["out"]                              # (E, out_dim), (out_dim,)
        owp = np.zeros((E, out_pad), np.float32)
        owp[:, :out_dim] = np.asarray(ow)
        obp = np.zeros((1, out_pad), np.float32)
        obp[0, :out_dim] = np.asarray(ob)
        outw.append(owp)
        outb.append(obp)

        s = np.zeros((out_pad, boost_dim), np.float32)   # one-hot scatter matrix
        for c in range(out_dim):
            s[c, i * out_dim + c] = 1.0
        sel.append(s)

    # rep[l, l*E + e] = 1  -> (scaled @ rep)[b, l*E + e] == scaled[b, l]
    rep = np.kron(np.eye(num_leaves, dtype=np.float32),
                  np.ones((1, E), np.float32))           # (L, L*E)
    # bsum[l*E + e, e'] = 1[e == e']  -> sums over leaves
    bsum = np.kron(np.ones((num_leaves, 1), np.float32),
                   np.eye(E, dtype=np.float32))          # (L*E, E)

    def J(lst):
        return jnp.asarray(np.stack(lst, axis=0))

    return dict(
        l1x_w=J(l1x), l1bo_w=J(l1bo), l1_b=J(l1b),
        emb_w=J(embw), emb_b=J(embb),
        pre_w=J(prew), pre_b=J(preb),
        node_wn=J(nodewn),
        lv_w=J(lvw), lv_b=J(lvb),
        out_w=J(outw), out_b=J(outb),
        sel=J(sel),
        sr_t=jnp.asarray(sr.T), sl_t=jnp.asarray(sl.T),
        rep=jnp.asarray(rep), bsum=jnp.asarray(bsum),
    )


# ----------------------------------------------------------------------------
# Pure-JAX reference (for validation only)
# ----------------------------------------------------------------------------
def _tree_ref(xb, raw, sr_t, sl_t, *, embed_dim, max_entropy):
    w, b = raw["l1"]; h = jax.nn.relu(xb @ w + b)
    for (we, be) in raw["embed"]:
        h = jax.nn.relu(h @ we + be)
    w, b = raw["pre"]; z = jax.nn.relu(h @ w + b)
    zn = z / jnp.maximum(jnp.linalg.norm(z, axis=1, keepdims=True), 1e-12)
    nwt = raw["node_wt"]
    wn = nwt / jnp.maximum(jnp.linalg.norm(nwt, axis=0, keepdims=True), 1e-12)
    right = zn @ wn
    rd = (1.0 - right) * 0.5
    ld = 1.0 - rd
    eps = 0.01
    ll = (jnp.log(jnp.clip(rd, eps, 1 - eps)) @ sr_t
          + jnp.log(jnp.clip(ld, eps, 1 - eps)) @ sl_t)
    scaled = jnp.exp(ll)
    ent = -jnp.sum(scaled * ll, axis=1)
    factor = 0.0 + 1.0 + jnp.mean(ent / max_entropy)
    lw, lb = raw["leaves"]
    res = (z @ lw + lb).reshape(z.shape[0], -1, embed_dim)
    mix = jnp.sum(scaled[:, :, None] * res, axis=1) * factor
    ow, ob = raw["out"]
    return mix @ ow + ob


def dboostree_ref(x, raw_trees, sr_t, sl_t, *, embed_dim, max_entropy):
    B = x.shape[0]
    xb = x.reshape(B, -1)
    outs = []
    for raw in raw_trees:
        o = _tree_ref(xb, raw, sr_t, sl_t, embed_dim=embed_dim,
                      max_entropy=max_entropy)
        outs.append(o)
        xb = jnp.concatenate([xb, o], axis=1)
    return jnp.cumsum(jnp.stack(outs, axis=0), axis=0)


# ----------------------------------------------------------------------------
if __name__ == "__main__":
    B = 2
    num_trees = 2
    depth = 2
    embed_dim = 32
    out_dim = 1                      # "+i" feature boosting implies scalar tree output
    num_leaves = 2 ** (depth + 1)
    max_entropy = (num_leaves / depth) * math.log(depth)

    key = jax.random.PRNGKey(0)
    kx, kp = jax.random.split(key)
    x = jax.random.normal(kx, (B, 4, 4), jnp.float32)   # flattened to F = 16 features
    flat_dim = int(np.prod(x.shape[1:]))

    f_pad = _round_up(flat_dim, 128)
    out_pad = _round_up(out_dim, 128)
    boost_dim = _round_up(num_trees * out_dim, 8)
    b_pad = _round_up(B, 8)
    assert b_pad <= 2048  # whole padded batch kept resident in one VMEM tile

    sr, sl = build_route_matrices(depth)

    tree_keys = jax.random.split(kp, num_trees)
    raw_trees = [init_tree_params(tree_keys[i], flat_dim + i * out_dim,
                                  embed_dim, depth, out_dim)
                 for i in range(num_trees)]
    params = stack_tree_params(raw_trees, sr, sl, flat_dim=flat_dim,
                               f_pad=f_pad, embed_dim=embed_dim, depth=depth,
                               out_dim=out_dim, out_pad=out_pad,
                               boost_dim=boost_dim)

    common = dict(num_trees=num_trees, depth=depth, out_dim=out_dim,
                  flat_dim=flat_dim, f_pad=f_pad, out_pad=out_pad,
                  boost_dim=boost_dim, b_pad=b_pad, max_entropy=max_entropy)

    fwd = jax.jit(functools.partial(dboostree_forward, use_bf16=False, **common))
    out = jax.block_until_ready(fwd(x, params))
    assert out.shape == (num_trees, B, out_dim)
    assert bool(jnp.all(jnp.isfinite(out)))

    ref = dboostree_ref(x, raw_trees, jnp.asarray(sr.T), jnp.asarray(sl.T),
                        embed_dim=embed_dim, max_entropy=max_entropy)
    np.testing.assert_allclose(np.asarray(out), np.asarray(ref),
                               rtol=1e-3, atol=1e-3)

    # bf16 MXU path (recommended on v6e/v7x): compile, run, sanity-check.
    fwd_bf16 = jax.jit(functools.partial(dboostree_forward, use_bf16=True,
                                         **common))
    out_bf16 = jax.block_until_ready(fwd_bf16(x, params))
    assert out_bf16.shape == (num_trees, B, out_dim)
    assert bool(jnp.all(jnp.isfinite(out_bf16)))

    print("KERNEL_OK")
</pallas_src>

<mosaic_0001>
module attributes {stable_mosaic.version = 11 : i64} {
  func.func @_dboostree_fused_kernel(%arg0: i32, %arg1: memref<8x128xf32, #tpu.memory_space<vmem>>, %arg2: memref<1x128x32xf32, #tpu.memory_space<vmem>>, %arg3: memref<1x8x32xf32, #tpu.memory_space<vmem>>, %arg4: memref<1x1x32xf32, #tpu.memory_space<vmem>>, %arg5: memref<1x2x32x32xf32, #tpu.memory_space<vmem>>, %arg6: memref<1x2x1x32xf32, #tpu.memory_space<vmem>>, %arg7: memref<1x32x33xf32, #tpu.memory_space<vmem>>, %arg8: memref<1x1x33xf32, #tpu.memory_space<vmem>>, %arg9: memref<1x33x7xf32, #tpu.memory_space<vmem>>, %arg10: memref<1x33x256xf32, #tpu.memory_space<vmem>>, %arg11: memref<1x1x256xf32, #tpu.memory_space<vmem>>, %arg12: memref<1x32x128xf32, #tpu.memory_space<vmem>>, %arg13: memref<1x1x128xf32, #tpu.memory_space<vmem>>, %arg14: memref<1x128x8xf32, #tpu.memory_space<vmem>>, %arg15: memref<7x8xf32, #tpu.memory_space<vmem>>, %arg16: memref<7x8xf32, #tpu.memory_space<vmem>>, %arg17: memref<8x256xf32, #tpu.memory_space<vmem>>, %arg18: memref<256x32xf32, #tpu.memory_space<vmem>>, %arg19: memref<1x8x128xf32, #tpu.memory_space<vmem>>, %arg20: memref<8x128xf32, #tpu.memory_space<vmem>>, %arg21: memref<8x8xf32, #tpu.memory_space<vmem>>) attributes {dimension_semantics = [#tpu.dimension_semantics<arbitrary>], iteration_bounds = array<i64: 2>, scalar_prefetch = 0 : i64, scratch_operands = 2 : i64, tpu.core_type = #tpu.core_type<tc>, window_params = [{pipeline_mode = #tpu.pipeline_mode<synchronous>, transform_indices = @transform_0, window_bounds = array<i64: 8, 128>}, {transform_indices = @transform_1, window_bounds = array<i64: 1, 128, 32>}, {transform_indices = @transform_2, window_bounds = array<i64: 1, 8, 32>}, {transform_indices = @transform_3, window_bounds = array<i64: 1, 1, 32>}, {transform_indices = @transform_4, window_bounds = array<i64: 1, 2, 32, 32>}, {transform_indices = @transform_5, window_bounds = array<i64: 1, 2, 1, 32>}, {transform_indices = @transform_6, window_bounds = array<i64: 1, 32, 33>}, {transform_indices = @transform_7, window_bounds = array<i64: 1, 1, 33>}, {transform_indices = @transform_8, window_bounds = array<i64: 1, 33, 7>}, {transform_indices = @transform_9, window_bounds = array<i64: 1, 33, 256>}, {transform_indices = @transform_10, window_bounds = array<i64: 1, 1, 256>}, {transform_indices = @transform_11, window_bounds = array<i64: 1, 32, 128>}, {transform_indices = @transform_12, window_bounds = array<i64: 1, 1, 128>}, {transform_indices = @transform_13, window_bounds = array<i64: 1, 128, 8>}, {pipeline_mode = #tpu.pipeline_mode<synchronous>, transform_indices = @transform_14, window_bounds = array<i64: 7, 8>}, {pipeline_mode = #tpu.pipeline_mode<synchronous>, transform_indices = @transform_15, window_bounds = array<i64: 7, 8>}, {pipeline_mode = #tpu.pipeline_mode<synchronous>, transform_indices = @transform_16, window_bounds = array<i64: 8, 256>}, {pipeline_mode = #tpu.pipeline_mode<synchronous>, transform_indices = @transform_17, window_bounds = array<i64: 256, 32>}, {transform_indices = @transform_18, window_bounds = array<i64: 1, 8, 128>}]} {
    %c0_i32 = arith.constant 0 : i32
    %0 = arith.cmpi eq, %arg0, %c0_i32 : i32
    %1 = arith.extui %0 : i1 to i32
    %c0_i32_0 = arith.constant 0 : i32
    %2 = arith.cmpi ne, %1, %c0_i32_0 : i32
    scf.if %2 {
      %cst_104 = arith.constant 0.000000e+00 : f32
      %128 = vector.broadcast %cst_104 : f32 to vector<8x128xf32>
      %c0_105 = arith.constant 0 : index
      %c0_106 = arith.constant 0 : index
      %129 = vector.load %arg20[%c0_105, %c0_106] : memref<8x128xf32, #tpu.memory_space<vmem>>, vector<8x128xf32>
      tpu.vector_store %arg20[%c0_105, %c0_106], %128 {strides = array<i32>} : memref<8x128xf32, #tpu.memory_space<vmem>>, vector<8x128xf32>,
      %cst_107 = arith.constant 0.000000e+00 : f32
      %130 = vector.broadcast %cst_107 : f32 to vector<8x8xf32>
      %c0_108 = arith.constant 0 : index
      %c0_109 = arith.constant 0 : index
      %131 = vector.load %arg21[%c0_108, %c0_109] : memref<8x8xf32, #tpu.memory_space<vmem>>, vector<8x8xf32>
      tpu.vector_store %arg21[%c0_108, %c0_109], %130 {strides = array<i32>} : memref<8x8xf32, #tpu.memory_space<vmem>>, vector<8x8xf32>,
    } else {
    }
    %c0 = arith.constant 0 : index
    %c0_1 = arith.constant 0 : index
    %3 = vector.load %arg1[%c0, %c0_1] : memref<8x128xf32, #tpu.memory_space<vmem>>, vector<8x128xf32>
    %c0_2 = arith.constant 0 : index
    %c0_3 = arith.constant 0 : index
    %c0_4 = arith.constant 0 : index
    %4 = vector.load %arg2[%c0_2, %c0_3, %c0_4] : memref<1x128x32xf32, #tpu.memory_space<vmem>>, vector<1x128x32xf32>
    %5 = vector.shape_cast %4 : vector<1x128x32xf32> to vector<128x32xf32>
    %cst = arith.constant dense<0.000000e+00> : vector<8x32xf32>
    %6 = tpu.matmul %3, %5, %cst {dimension_numbers = #tpu.dot_dimension_numbers<[1], [0], [0], [1], [0, 0, 1, 1], [], []>} : vector<8x128xf32>, vector<128x32xf32>, vector<8x32xf32> -> vector<8x32xf32>
    %c0_5 = arith.constant 0 : index
    %c0_6 = arith.constant 0 : index
    %7 = vector.load %arg21[%c0_5, %c0_6] : memref<8x8xf32, #tpu.memory_space<vmem>>, vector<8x8xf32>
    %c0_7 = arith.constant 0 : index
    %c0_8 = arith.constant 0 : index
    %c0_9 = arith.constant 0 : index
    %8 = vector.load %arg3[%c0_7, %c0_8, %c0_9] : memref<1x8x32xf32, #tpu.memory_space<vmem>>, vector<1x8x32xf32>
    %9 = vector.shape_cast %8 : vector<1x8x32xf32> to vector<8x32xf32>
    %cst_10 = arith.constant dense<0.000000e+00> : vector<8x32xf32>
    %10 = tpu.matmul %7, %9, %cst_10 {dimension_numbers = #tpu.dot_dimension_numbers<[1], [0], [0], [1], [0, 0, 1, 1], [], []>} : vector<8x8xf32>, vector<8x32xf32>, vector<8x32xf32> -> vector<8x32xf32>
    %11 = arith.addf %6, %10 : vector<8x32xf32>
    %c0_11 = arith.constant 0 : index
    %c0_12 = arith.constant 0 : index
    %c0_13 = arith.constant 0 : index
    %12 = vector.load %arg4[%c0_11, %c0_12, %c0_13] : memref<1x1x32xf32, #tpu.memory_space<vmem>>, vector<1x1x32xf32>
    %13 = vector.shape_cast %12 : vector<1x1x32xf32> to vector<1x32xf32>
    %14 = vector.broadcast %13 : vector<1x32xf32> to vector<8x32xf32>
    %15 = arith.addf %11, %14 : vector<8x32xf32>
    %cst_14 = arith.constant 0.000000e+00 : f32
    %16 = vector.broadcast %cst_14 : f32 to vector<8x32xf32>
    %17 = arith.maximumf %15, %16 : vector<8x32xf32>
    %c0_15 = arith.constant 0 : index
    %c0_16 = arith.constant 0 : index
    %c0_17 = arith.constant 0 : index
    %c0_18 = arith.constant 0 : index
    %18 = vector.load %arg5[%c0_15, %c0_16, %c0_17, %c0_18] : memref<1x2x32x32xf32, #tpu.memory_space<vmem>>, vector<1x1x32x32xf32>
    %19 = vector.shape_cast %18 : vector<1x1x32x32xf32> to vector<32x32xf32>
    %cst_19 = arith.constant dense<0.000000e+00> : vector<8x32xf32>
    %20 = tpu.matmul %17, %19, %cst_19 {dimension_numbers = #tpu.dot_dimension_numbers<[1], [0], [0], [1], [0, 0, 1, 1], [], []>} : vector<8x32xf32>, vector<32x32xf32>, vector<8x32xf32> -> vector<8x32xf32>
    %c0_20 = arith.constant 0 : index
    %c0_21 = arith.constant 0 : index
    %c0_22 = arith.constant 0 : index
    %c0_23 = arith.constant 0 : index
    %21 = vector.load %arg6[%c0_20, %c0_21, %c0_22, %c0_23] : memref<1x2x1x32xf32, #tpu.memory_space<vmem>>, vector<1x1x1x32xf32>
    %22 = vector.shape_cast %21 : vector<1x1x1x32xf32> to vector<1x32xf32>
    %23 = vector.broadcast %22 : vector<1x32xf32> to vector<8x32xf32>
    %24 = arith.addf %20, %23 : vector<8x32xf32>
    %cst_24 = arith.constant 0.000000e+00 : f32
    %25 = vector.broadcast %cst_24 : f32 to vector<8x32xf32>
    %26 = arith.maximumf %24, %25 : vector<8x32xf32>
    %c0_25 = arith.constant 0 : index
    %c1 = arith.constant 1 : index
    %c0_26 = arith.constant 0 : index
    %c0_27 = arith.constant 0 : index
    %27 = vector.load %arg5[%c0_25, %c1, %c0_26, %c0_27] : memref<1x2x32x32xf32, #tpu.memory_space<vmem>>, vector<1x1x32x32xf32>
    %28 = vector.shape_cast %27 : vector<1x1x32x32xf32> to vector<32x32xf32>
    %cst_28 = arith.constant dense<0.000000e+00> : vector<8x32xf32>
    %29 = tpu.matmul %26, %28, %cst_28 {dimension_numbers = #tpu.dot_dimension_numbers<[1], [0], [0], [1], [0, 0, 1, 1], [], []>} : vector<8x32xf32>, vector<32x32xf32>, vector<8x32xf32> -> vector<8x32xf32>
    %c0_29 = arith.constant 0 : index
    %c1_30 = arith.constant 1 : index
    %c0_31 = arith.constant 0 : index
    %c0_32 = arith.constant 0 : index
    %30 = vector.load %arg6[%c0_29, %c1_30, %c0_31, %c0_32] : memref<1x2x1x32xf32, #tpu.memory_space<vmem>>, vector<1x1x1x32xf32>
    %31 = vector.shape_cast %30 : vector<1x1x1x32xf32> to vector<1x32xf32>
    %32 = vector.broadcast %31 : vector<1x32xf32> to vector<8x32xf32>
    %33 = arith.addf %29, %32 : vector<8x32xf32>
    %cst_33 = arith.constant 0.000000e+00 : f32
    %34 = vector.broadcast %cst_33 : f32 to vector<8x32xf32>
    %35 = arith.maximumf %33, %34 : vector<8x32xf32>
    %c0_34 = arith.constant 0 : index
    %c0_35 = arith.constant 0 : index
    %c0_36 = arith.constant 0 : index
    %36 = vector.load %arg7[%c0_34, %c0_35, %c0_36] : memref<1x32x33xf32, #tpu.memory_space<vmem>>, vector<1x32x33xf32>
    %37 = vector.shape_cast %36 : vector<1x32x33xf32> to vector<32x33xf32>
    %cst_37 = arith.constant dense<0.000000e+00> : vector<8x33xf32>
    %38 = tpu.matmul %35, %37, %cst_37 {dimension_numbers = #tpu.dot_dimension_numbers<[1], [0], [0], [1], [0, 0, 1, 1], [], []>} : vector<8x32xf32>, vector<32x33xf32>, vector<8x33xf32> -> vector<8x33xf32>
    %c0_38 = arith.constant 0 : index
    %c0_39 = arith.constant 0 : index
    %c0_40 = arith.constant 0 : index
    %39 = vector.load %arg8[%c0_38, %c0_39, %c0_40] : memref<1x1x33xf32, #tpu.memory_space<vmem>>, vector<1x1x33xf32>
    %40 = vector.shape_cast %39 : vector<1x1x33xf32> to vector<1x33xf32>
    %41 = vector.broadcast %40 : vector<1x33xf32> to vector<8x33xf32>
    %42 = arith.addf %38, %41 : vector<8x33xf32>
    %cst_41 = arith.constant 0.000000e+00 : f32
    %43 = vector.broadcast %cst_41 : f32 to vector<8x33xf32>
    %44 = arith.maximumf %42, %43 : vector<8x33xf32>
    %45 = arith.mulf %44, %44 : vector<8x33xf32>
    %cst_42 = arith.constant dense<0.000000e+00> : vector<8xf32>
    %46 = vector.multi_reduction <add>, %45, %cst_42 [1] : vector<8x33xf32> to vector<8xf32>
    %47 = vector.shape_cast %46 : vector<8xf32> to vector<8x1xf32>
    %cst_43 = arith.constant 1.000000e-24 : f32
    %48 = vector.broadcast %cst_43 : f32 to vector<8x1xf32>
    %49 = arith.maximumf %47, %48 : vector<8x1xf32>
    %50 = math.rsqrt %49 : vector<8x1xf32>
    %51 = vector.broadcast %50 : vector<8x1xf32> to vector<8x33xf32>
    %52 = arith.mulf %44, %51 : vector<8x33xf32>
    %c0_44 = arith.constant 0 : index
    %c0_45 = arith.constant 0 : index
    %c0_46 = arith.constant 0 : index
    %53 = vector.load %arg9[%c0_44, %c0_45, %c0_46] : memref<1x33x7xf32, #tpu.memory_space<vmem>>, vector<1x33x7xf32>
    %54 = vector.shape_cast %53 : vector<1x33x7xf32> to vector<33x7xf32>
    %cst_47 = arith.constant dense<0.000000e+00> : vector<8x7xf32>
    %55 = tpu.matmul %52, %54, %cst_47 {dimension_numbers = #tpu.dot_dimension_numbers<[1], [0], [0], [1], [0, 0, 1, 1], [], []>} : vector<8x33xf32>, vector<33x7xf32>, vector<8x7xf32> -> vector<8x7xf32>
    %cst_48 = arith.constant 1.000000e+00 : f32
    %56 = vector.broadcast %cst_48 : f32 to vector<8x7xf32>
    %57 = arith.subf %56, %55 : vector<8x7xf32>
    %cst_49 = arith.constant 5.000000e-01 : f32
    %58 = vector.broadcast %cst_49 : f32 to vector<8x7xf32>
    %59 = arith.mulf %57, %58 : vector<8x7xf32>
    %cst_50 = arith.constant 1.000000e+00 : f32
    %60 = vector.broadcast %cst_50 : f32 to vector<8x7xf32>
    %61 = arith.subf %60, %59 : vector<8x7xf32>
    %cst_51 = arith.constant 0.00999999977 : f32
    %cst_52 = arith.constant 9.900000e-01 : f32
    %62 = vector.broadcast %cst_51 : f32 to vector<8x7xf32>
    %63 = arith.maximumf %62, %59 : vector<8x7xf32>
    %64 = vector.broadcast %cst_52 : f32 to vector<8x7xf32>
    %65 = arith.minimumf %64, %63 : vector<8x7xf32>
    %66 = math.log %65 : vector<8x7xf32>
    %cst_53 = arith.constant 0.00999999977 : f32
    %cst_54 = arith.constant 9.900000e-01 : f32
    %67 = vector.broadcast %cst_53 : f32 to vector<8x7xf32>
    %68 = arith.maximumf %67, %61 : vector<8x7xf32>
    %69 = vector.broadcast %cst_54 : f32 to vector<8x7xf32>
    %70 = arith.minimumf %69, %68 : vector<8x7xf32>
    %71 = math.log %70 : vector<8x7xf32>
    %c0_55 = arith.constant 0 : index
    %c0_56 = arith.constant 0 : index
    %72 = vector.load %arg15[%c0_55, %c0_56] : memref<7x8xf32, #tpu.memory_space<vmem>>, vector<7x8xf32>
    %cst_57 = arith.constant dense<0.000000e+00> : vector<8x8xf32>
    %73 = tpu.matmul %66, %72, %cst_57 {dimension_numbers = #tpu.dot_dimension_numbers<[1], [0], [0], [1], [0, 0, 1, 1], [], []>} : vector<8x7xf32>, vector<7x8xf32>, vector<8x8xf32> -> vector<8x8xf32>
    %c0_58 = arith.constant 0 : index
    %c0_59 = arith.constant 0 : index
    %74 = vector.load %arg16[%c0_58, %c0_59] : memref<7x8xf32, #tpu.memory_space<vmem>>, vector<7x8xf32>
    %cst_60 = arith.constant dense<0.000000e+00> : vector<8x8xf32>
    %75 = tpu.matmul %71, %74, %cst_60 {dimension_numbers = #tpu.dot_dimension_numbers<[1], [0], [0], [1], [0, 0, 1, 1], [], []>} : vector<8x7xf32>, vector<7x8xf32>, vector<8x8xf32> -> vector<8x8xf32>
    %76 = arith.addf %73, %75 : vector<8x8xf32>
    %77 = math.exp %76 : vector<8x8xf32>
    %78 = arith.mulf %77, %76 : vector<8x8xf32>
    %cst_61 = arith.constant dense<0.000000e+00> : vector<8xf32>
    %79 = vector.multi_reduction <add>, %78, %cst_61 [1] : vector<8x8xf32> to vector<8xf32>
    %80 = vector.shape_cast %79 : vector<8xf32> to vector<8x1xf32>
    %cst_62 = arith.constant 0.000000e+00 : f32
    %81 = vector.broadcast %cst_62 : f32 to vector<8x1xf32>
    %82 = arith.subf %81, %80 : vector<8x1xf32>
    %83 = tpu.iota {dimensions = array<i32: 0>} : vector<8x1xi32>
    %c2_i32 = arith.constant 2 : i32
    %84 = vector.broadcast %c2_i32 : i32 to vector<8x1xi32>
    %85 = arith.cmpi slt, %83, %84 : vector<8x1xi32>
    %cst_63 = arith.constant 0.000000e+00 : f32
    %86 = vector.broadcast %cst_63 : f32 to vector<8x1xf32>
    %87 = arith.select %85, %82, %86 : vector<8x1xi1>, vector<8x1xf32>
    %88 = vector.shape_cast %87 : vector<8x1xf32> to vector<1x8x1xf32>
    %cst_64 = arith.constant dense<0.000000e+00> : vector<1xf32>
    %89 = vector.multi_reduction <add>, %88, %cst_64 [1, 2] : vector<1x8x1xf32> to vector<1xf32>
    %90 = vector.shape_cast %89 : vector<1xf32> to vector<1x1x1xf32>
    %91 = vector.extract %90[0, 0, 0] : f32 from vector<1x1x1xf32>
    %cst_65 = arith.constant 0.180336878 : f32
    %92 = arith.mulf %91, %cst_65 : f32
    %cst_66 = arith.constant 1.000000e+00 : f32
    %93 = arith.addf %cst_66, %92 : f32
    %c0_67 = arith.constant 0 : index
    %c0_68 = arith.constant 0 : index
    %c0_69 = arith.constant 0 : index
    %94 = vector.load %arg10[%c0_67, %c0_68, %c0_69] : memref<1x33x256xf32, #tpu.memory_space<vmem>>, vector<1x33x256xf32>
    %95 = vector.shape_cast %94 : vector<1x33x256xf32> to vector<33x256xf32>
    %cst_70 = arith.constant dense<0.000000e+00> : vector<8x256xf32>
    %96 = tpu.matmul %44, %95, %cst_70 {dimension_numbers = #tpu.dot_dimension_numbers<[1], [0], [0], [1], [0, 0, 1, 1], [], []>} : vector<8x33xf32>, vector<33x256xf32>, vector<8x256xf32> -> vector<8x256xf32>
    %c0_71 = arith.constant 0 : index
    %c0_72 = arith.constant 0 : index
    %c0_73 = arith.constant 0 : index
    %97 = vector.load %arg11[%c0_71, %c0_72, %c0_73] : memref<1x1x256xf32, #tpu.memory_space<vmem>>, vector<1x1x256xf32>
    %98 = vector.shape_cast %97 : vector<1x1x256xf32> to vector<1x256xf32>
    %99 = vector.broadcast %98 : vector<1x256xf32> to vector<8x256xf32>
    %100 = arith.addf %96, %99 : vector<8x256xf32>
    %c0_74 = arith.constant 0 : index
    %c0_75 = arith.constant 0 : index
    %101 = vector.load %arg17[%c0_74, %c0_75] : memref<8x256xf32, #tpu.memory_space<vmem>>, vector<8x256xf32>
    %cst_76 = arith.constant dense<0.000000e+00> : vector<8x256xf32>
    %102 = tpu.matmul %77, %101, %cst_76 {dimension_numbers = #tpu.dot_dimension_numbers<[1], [0], [0], [1], [0, 0, 1, 1], [], []>} : vector<8x8xf32>, vector<8x256xf32>, vector<8x256xf32> -> vector<8x256xf32>
    %103 = arith.mulf %102, %100 : vector<8x256xf32>
    %c0_77 = arith.constant 0 : index
    %c0_78 = arith.constant 0 : index
    %104 = vector.load %arg18[%c0_77, %c0_78] : memref<256x32xf32, #tpu.memory_space<vmem>>, vector<256x32xf32>
    %cst_79 = arith.constant dense<0.000000e+00> : vector<8x32xf32>
    %105 = tpu.matmul %103, %104, %cst_79 {dimension_numbers = #tpu.dot_dimension_numbers<[1], [0], [0], [1], [0, 0, 1, 1], [], []>} : vector<8x256xf32>, vector<256x32xf32>, vector<8x32xf32> -> vector<8x32xf32>
    %c0_80 = arith.constant 0 : index
    %c0_81 = arith.constant 0 : index
    %c0_82 = arith.constant 0 : index
    %106 = vector.load %arg12[%c0_80, %c0_81, %c0_82] : memref<1x32x128xf32, #tpu.memory_space<vmem>>, vector<1x32x128xf32>
    %107 = vector.shape_cast %106 : vector<1x32x128xf32> to vector<32x128xf32>
    %cst_83 = arith.constant dense<0.000000e+00> : vector<8x128xf32>
    %108 = tpu.matmul %105, %107, %cst_83 {dimension_numbers = #tpu.dot_dimension_numbers<[1], [0], [0], [1], [0, 0, 1, 1], [], []>} : vector<8x32xf32>, vector<32x128xf32>, vector<8x128xf32> -> vector<8x128xf32>
    %109 = vector.broadcast %93 : f32 to vector<8x128xf32>
    %110 = arith.mulf %109, %108 : vector<8x128xf32>
    %c0_84 = arith.constant 0 : index
    %c0_85 = arith.constant 0 : index
    %c0_86 = arith.constant 0 : index
    %111 = vector.load %arg13[%c0_84, %c0_85, %c0_86] : memref<1x1x128xf32, #tpu.memory_space<vmem>>, vector<1x1x128xf32>
    %112 = vector.shape_cast %111 : vector<1x1x128xf32> to vector<1x128xf32>
    %113 = vector.broadcast %112 : vector<1x128xf32> to vector<8x128xf32>
    %114 = arith.addf %110, %113 : vector<8x128xf32>
    %c0_87 = arith.constant 0 : index
    %c0_88 = arith.constant 0 : index
    %115 = vector.load %arg20[%c0_87, %c0_88] : memref<8x128xf32, #tpu.memory_space<vmem>>, vector<8x128xf32>
    %116 = arith.addf %115, %114 : vector<8x128xf32>
    %c0_89 = arith.constant 0 : index
    %c0_90 = arith.constant 0 : index
    %117 = vector.load %arg20[%c0_89, %c0_90] : memref<8x128xf32, #tpu.memory_space<vmem>>, vector<8x128xf32>
    tpu.vector_store %arg20[%c0_89, %c0_90], %116 {strides = array<i32>} : memref<8x128xf32, #tpu.memory_space<vmem>>, vector<8x128xf32>,
    %c0_91 = arith.constant 0 : index
    %c0_92 = arith.constant 0 : index
    %118 = vector.load %arg20[%c0_91, %c0_92] : memref<8x128xf32, #tpu.memory_space<vmem>>, vector<8x128xf32>
    %c0_93 = arith.constant 0 : index
    %c0_94 = arith.constant 0 : index
    %c0_95 = arith.constant 0 : index
    %119 = vector.load %arg19[%c0_93, %c0_94, %c0_95] : memref<1x8x128xf32, #tpu.memory_space<vmem>>, vector<1x8x128xf32>
    %120 = vector.shape_cast %119 : vector<1x8x128xf32> to vector<8x128xf32>
    %121 = vector.shape_cast %118 : vector<8x128xf32> to vector<1x8x128xf32>
    tpu.vector_store %arg19[%c0_93, %c0_94, %c0_95], %121 {strides = array<i32>} : memref<1x8x128xf32, #tpu.memory_space<vmem>>, vector<1x8x128xf32>,
    %c0_96 = arith.constant 0 : index
    %c0_97 = arith.constant 0 : index
    %122 = vector.load %arg21[%c0_96, %c0_97] : memref<8x8xf32, #tpu.memory_space<vmem>>, vector<8x8xf32>
    %c0_98 = arith.constant 0 : index
    %c0_99 = arith.constant 0 : index
    %c0_100 = arith.constant 0 : index
    %123 = vector.load %arg14[%c0_98, %c0_99, %c0_100] : memref<1x128x8xf32, #tpu.memory_space<vmem>>, vector<1x128x8xf32>
    %124 = vector.shape_cast %123 : vector<1x128x8xf32> to vector<128x8xf32>
    %cst_101 = arith.constant dense<0.000000e+00> : vector<8x8xf32>
    %125 = tpu.matmul %114, %124, %cst_101 {dimension_numbers = #tpu.dot_dimension_numbers<[1], [0], [0], [1], [0, 0, 1, 1], [], []>} : vector<8x128xf32>, vector<128x8xf32>, vector<8x8xf32> -> vector<8x8xf32>
    %126 = arith.addf %122, %125 : vector<8x8xf32>
    %c0_102 = arith.constant 0 : index
    %c0_103 = arith.constant 0 : index
    %127 = vector.load %arg21[%c0_102, %c0_103] : memref<8x8xf32, #tpu.memory_space<vmem>>, vector<8x8xf32>
    tpu.vector_store %arg21[%c0_102, %c0_103], %126 {strides = array<i32>} : memref<8x8xf32, #tpu.memory_space<vmem>>, vector<8x8xf32>,
    return
  }
  func.func @transform_0(%arg0: i32) -> (i32, i32) {
    %c0_i32 = arith.constant 0 : i32
    %c0_i32_0 = arith.constant 0 : i32
    %c0_i32_1 = arith.constant 0 : i32
    return %c0_i32, %c0_i32_0 : i32, i32
  }
  func.func @transform_1(%arg0: i32) -> (i32, i32, i32) {
    %c0_i32 = arith.constant 0 : i32
    %c0_i32_0 = arith.constant 0 : i32
    %c0_i32_1 = arith.constant 0 : i32
    return %arg0, %c0_i32, %c0_i32_0 : i32, i32, i32
  }
  func.func @transform_2(%arg0: i32) -> (i32, i32, i32) {
    %c0_i32 = arith.constant 0 : i32
    %c0_i32_0 = arith.constant 0 : i32
    %c0_i32_1 = arith.constant 0 : i32
    return %arg0, %c0_i32, %c0_i32_0 : i32, i32, i32
  }
  func.func @transform_3(%arg0: i32) -> (i32, i32, i32) {
    %c0_i32 = arith.constant 0 : i32
    %c0_i32_0 = arith.constant 0 : i32
    %c0_i32_1 = arith.constant 0 : i32
    return %arg0, %c0_i32, %c0_i32_0 : i32, i32, i32
  }
  func.func @transform_4(%arg0: i32) -> (i32, i32, i32, i32) {
    %c0_i32 = arith.constant 0 : i32
    %c0_i32_0 = arith.constant 0 : i32
    %c0_i32_1 = arith.constant 0 : i32
    %c0_i32_2 = arith.constant 0 : i32
    return %arg0, %c0_i32, %c0_i32_0, %c0_i32_1 : i32, i32, i32, i32
  }
  func.func @transform_5(%arg0: i32) -> (i32, i32, i32, i32) {
    %c0_i32 = arith.constant 0 : i32
    %c0_i32_0 = arith.constant 0 : i32
    %c0_i32_1 = arith.constant 0 : i32
    %c0_i32_2 = arith.constant 0 : i32
    return %arg0, %c0_i32, %c0_i32_0, %c0_i32_1 : i32, i32, i32, i32
  }
  func.func @transform_6(%arg0: i32) -> (i32, i32, i32) {
    %c0_i32 = arith.constant 0 : i32
    %c0_i32_0 = arith.constant 0 : i32
    %c0_i32_1 = arith.constant 0 : i32
    return %arg0, %c0_i32, %c0_i32_0 : i32, i32, i32
  }
  func.func @transform_7(%arg0: i32) -> (i32, i32, i32) {
    %c0_i32 = arith.constant 0 : i32
    %c0_i32_0 = arith.constant 0 : i32
    %c0_i32_1 = arith.constant 0 : i32
    return %arg0, %c0_i32, %c0_i32_0 : i32, i32, i32
  }
  func.func @transform_8(%arg0: i32) -> (i32, i32, i32) {
    %c0_i32 = arith.constant 0 : i32
    %c0_i32_0 = arith.constant 0 : i32
    %c0_i32_1 = arith.constant 0 : i32
    return %arg0, %c0_i32, %c0_i32_0 : i32, i32, i32
  }
  func.func @transform_9(%arg0: i32) -> (i32, i32, i32) {
    %c0_i32 = arith.constant 0 : i32
    %c0_i32_0 = arith.constant 0 : i32
    %c0_i32_1 = arith.constant 0 : i32
    return %arg0, %c0_i32, %c0_i32_0 : i32, i32, i32
  }
  func.func @transform_10(%arg0: i32) -> (i32, i32, i32) {
    %c0_i32 = arith.constant 0 : i32
    %c0_i32_0 = arith.constant 0 : i32
    %c0_i32_1 = arith.constant 0 : i32
    return %arg0, %c0_i32, %c0_i32_0 : i32, i32, i32
  }
  func.func @transform_11(%arg0: i32) -> (i32, i32, i32) {
    %c0_i32 = arith.constant 0 : i32
    %c0_i32_0 = arith.constant 0 : i32
    %c0_i32_1 = arith.constant 0 : i32
    return %arg0, %c0_i32, %c0_i32_0 : i32, i32, i32
  }
  func.func @transform_12(%arg0: i32) -> (i32, i32, i32) {
    %c0_i32 = arith.constant 0 : i32
    %c0_i32_0 = arith.constant 0 : i32
    %c0_i32_1 = arith.constant 0 : i32
    return %arg0, %c0_i32, %c0_i32_0 : i32, i32, i32
  }
  func.func @transform_13(%arg0: i32) -> (i32, i32, i32) {
    %c0_i32 = arith.constant 0 : i32
    %c0_i32_0 = arith.constant 0 : i32
    %c0_i32_1 = arith.constant 0 : i32
    return %arg0, %c0_i32, %c0_i32_0 : i32, i32, i32
  }
  func.func @transform_14(%arg0: i32) -> (i32, i32) {
    %c0_i32 = arith.constant 0 : i32
    %c0_i32_0 = arith.constant 0 : i32
    %c0_i32_1 = arith.constant 0 : i32
    return %c0_i32, %c0_i32_0 : i32, i32
  }
  func.func @transform_15(%arg0: i32) -> (i32, i32) {
    %c0_i32 = arith.constant 0 : i32
    %c0_i32_0 = arith.constant 0 : i32
    %c0_i32_1 = arith.constant 0 : i32
    return %c0_i32, %c0_i32_0 : i32, i32
  }
  func.func @transform_16(%arg0: i32) -> (i32, i32) {
    %c0_i32 = arith.constant 0 : i32
    %c0_i32_0 = arith.constant 0 : i32
    %c0_i32_1 = arith.constant 0 : i32
    return %c0_i32, %c0_i32_0 : i32, i32
  }
  func.func @transform_17(%arg0: i32) -> (i32, i32) {
    %c0_i32 = arith.constant 0 : i32
    %c0_i32_0 = arith.constant 0 : i32
    %c0_i32_1 = arith.constant 0 : i32
    return %c0_i32, %c0_i32_0 : i32, i32
  }
  func.func @transform_18(%arg0: i32) -> (i32, i32, i32) {
    %c0_i32 = arith.constant 0 : i32
    %c0_i32_0 = arith.constant 0 : i32
    %c0_i32_1 = arith.constant 0 : i32
    return %arg0, %c0_i32, %c0_i32_0 : i32, i32, i32
  }
}

</mosaic_0001>

<llo_original>
// kernel: dboostree_forward.1
$region0: #{dboostree_forward.1}
  #allocation0 [shape = 'u32[]', space=smem, size = 0x4, offset = 0x4, fixed_abs, tag = 'smem constant byte address 0x4 - core index']
  #allocation1 [shape = 'u32[144,128]{1,0:T(1,128)}', space=vmem, size = 0x12000, scoped, tag = 'internal scratch']
  #allocation2 [shape = 'f32[8,128]{1,0:T(8,128)}', space=vmem, size = 0x1000, scoped, tag = 'scratch operand']
  #allocation3 [shape = 'f32[8,8]{1,0:T(8,128)}', space=vmem, size = 0x1000, scoped, tag = 'scratch operand']
  %s0 = inlined_call_operand.vmem [shape: f32[8,128], index: 0, kind: input, shape index: {}]
  %s1 = inlined_call_operand.vmem [shape: f32[2,128,32], index: 1, kind: input, shape index: {}]
  %s2 = inlined_call_operand.vmem [shape: f32[2,8,32], index: 2, kind: input, shape index: {}]
  %s3 = inlined_call_operand.vmem [shape: f32[2,1,32], index: 3, kind: input, shape index: {}]
  %s4 = inlined_call_operand.vmem [shape: f32[2,2,32,32], index: 4, kind: input, shape index: {}]
  %s5 = inlined_call_operand.vmem [shape: f32[2,2,1,32], index: 5, kind: input, shape index: {}]
  %s6 = inlined_call_operand.vmem [shape: f32[2,32,33], index: 6, kind: input, shape index: {}]
  %s7 = inlined_call_operand.vmem [shape: f32[2,1,33], index: 7, kind: input, shape index: {}]
  %s8 = inlined_call_operand.vmem [shape: f32[2,33,7], index: 8, kind: input, shape index: {}]
  %s9 = inlined_call_operand.vmem [shape: f32[2,33,256], index: 9, kind: input, shape index: {}]
  %s10 = inlined_call_operand.vmem [shape: f32[2,1,256], index: 10, kind: input, shape index: {}]
  %s11 = inlined_call_operand.vmem [shape: f32[2,32,128], index: 11, kind: input, shape index: {}]
  %s12 = inlined_call_operand.vmem [shape: f32[2,1,128], index: 12, kind: input, shape index: {}]
  %s13 = inlined_call_operand.vmem [shape: f32[2,128,8], index: 13, kind: input, shape index: {}]
  %s14 = inlined_call_operand.vmem [shape: f32[7,8], index: 14, kind: input, shape index: {}]
  %s15 = inlined_call_operand.vmem [shape: f32[7,8], index: 15, kind: input, shape index: {}]
  %s16 = inlined_call_operand.vmem [shape: f32[8,256], index: 16, kind: input, shape index: {}]
  %s17 = inlined_call_operand.vmem [shape: f32[256,32], index: 17, kind: input, shape index: {}]
  %s18 = inlined_call_operand.vmem [shape: f32[2,8,128], index: 18, kind: output, shape index: {}]
  %s19 = sld [smem:[#allocation0]]
  $region109: #{dboostree_forward.1} parent=0
    _
  %s21 = ssub.s32 1, %s19
  %s22 = scalar_select 0, %s21, %s19
  loop: start=0, step=1, limit=4
  $region2: #{dboostree_forward.1} parent=0 // loop_pre_header
    _
  $region3: #{dboostree_forward.1} parent=0 // loop_header
    %s24 = sphi 0, %s28
    %p25 = scmp.ge.s32.totalorder %s24, 4
    %s32 = sphi 0, %s32
    %s34 = sphi 0, %s32
    %s35 = sphi 0, %s34
    %s49 = sphi 0, %s35
    %s55 = sphi 0, %s57
    %s58 = sphi 0, %s55
    %s59 = sphi 0, %s58
    %s75 = sphi 0, %s59
    %s81 = sphi 0, %s83
    %s84 = sphi 0, %s81
    %s85 = sphi 0, %s84
    %s101 = sphi 0, %s85
    %s107 = sphi 0, %s109
    %s110 = sphi 0, %s107
    %s111 = sphi 0, %s110
    %s127 = sphi 0, %s111
    %s133 = sphi 0, %s135
    %s136 = sphi 0, %s133
    %s137 = sphi 0, %s136
    %s153 = sphi 0, %s137
    %s159 = sphi 0, %s161
    %s162 = sphi 0, %s159
    %s163 = sphi 0, %s162
    %s179 = sphi 0, %s163
    %s185 = sphi 0, %s187
    %s188 = sphi 0, %s185
    %s189 = sphi 0, %s188
    %s205 = sphi 0, %s189
    %s211 = sphi 0, %s213
    %s214 = sphi 0, %s211
    %s215 = sphi 0, %s214
    %s231 = sphi 0, %s215
    %s237 = sphi 0, %s239
    %s240 = sphi 0, %s237
    %s241 = sphi 0, %s240
    %s257 = sphi 0, %s241
    %s263 = sphi 0, %s265
    %s266 = sphi 0, %s263
    %s267 = sphi 0, %s266
    %s283 = sphi 0, %s267
    %s289 = sphi 0, %s291
    %s292 = sphi 0, %s289
    %s293 = sphi 0, %s292
    %s309 = sphi 0, %s293
    %s315 = sphi 0, %s317
    %s318 = sphi 0, %s315
    %s319 = sphi 0, %s318
    %s335 = sphi 0, %s319
    %s341 = sphi 0, %s343
    %s344 = sphi 0, %s341
    %s345 = sphi 0, %s344
    %s361 = sphi 0, %s345
    %s367 = sphi 0, %s369
    %s370 = sphi 0, %s367
    %s371 = sphi 0, %s370
    %s387 = sphi 0, %s371
    %s391 = sphi 0, %s391
    %s393 = sphi 0, %s391
    %s394 = sphi 0, %s393
    %s408 = sphi 0, %s394
    %s412 = sphi 0, %s412
    %s414 = sphi 0, %s412
    %s415 = sphi 0, %s414
    %s429 = sphi 0, %s415
    %s433 = sphi 0, %s433
    %s435 = sphi 0, %s433
    %s436 = sphi 0, %s435
    %s450 = sphi 0, %s436
    %s454 = sphi 0, %s454
    %s456 = sphi 0, %s454
    %s457 = sphi 0, %s456
    %s471 = sphi 0, %s457
    %s477 = sphi 0, %s479
    %s480 = sphi 0, %s477
    %s481 = sphi 0, %s480
    %s497 = sphi 0, %s481
  $region4: #{dboostree_forward.1} parent=0 // loop_header_branch
    %27 = sbr.rel (%p25) target = $region8
  $region5: #{dboostree_forward.1} parent=0 // loop_body
    %s29 = ssub.s32 %s24, 1
    %s30 = ssub.s32 %s24, 2
    %s31 = sadd.s32 %s24, 1
    %s33 = sadd.s32 %s32, 1
    %p36 = scmp.eq.s32.totalorder %s24, 1
    %p37 = scmp.ne.s32.totalorder %s32, %s34
    %p38 = scmp.eq.s32.totalorder %s24, 0
    %p39 = por %p37, %p38
    %p40 = scmp.ne.s32.totalorder %s32, %s34
    %p41 = scmp.eq.s32.totalorder %s29, 1
    %p42 = por %p40, %p41
    %p43 = scmp.ne.s32.totalorder %s34, %s35
    %p44 = scmp.eq.s32.totalorder %s29, 0
    %p45 = por %p43, %p44
    %p46 = scmp.ne.s32.totalorder %s34, %s35
    %p47 = scmp.eq.s32.totalorder %s30, 1
    %p48 = por %p46, %p47
    %p50 = scmp.ne.s32.totalorder %s35, %s49
    %p51 = scmp.eq.s32.totalorder %s30, 0
    %p52 = por %p50, %p51
    %s53 = ssub.s32 %s24, %s31
    %p54 = scmp.eq.s32.totalorder %s53, 0
    %s56 = sadd.s32 %s55, 1
    %s57 = scalar_select %p54, %s55, %s56
    %p60 = pneg %p54
    %p61 = scmp.eq.s32.totalorder %s24, 1
    %p62 = por %p60, %p61
    %p63 = scmp.ne.s32.totalorder %s55, %s58
    %p64 = scmp.eq.s32.totalorder %s24, 0
    %p65 = por %p63, %p64
    %p66 = scmp.ne.s32.totalorder %s55, %s58
    %p67 = scmp.eq.s32.totalorder %s29, 1
    %p68 = por %p66, %p67
    %p69 = scmp.ne.s32.totalorder %s58, %s59
    %p70 = scmp.eq.s32.totalorder %s29, 0
    %p71 = por %p69, %p70
    %p72 = scmp.ne.s32.totalorder %s58, %s59
    %p73 = scmp.eq.s32.totalorder %s30, 1
    %p74 = por %p72, %p73
    %p76 = scmp.ne.s32.totalorder %s59, %s75
    %p77 = scmp.eq.s32.totalorder %s30, 0
    %p78 = por %p76, %p77
    %s79 = ssub.s32 %s24, %s31
    %p80 = scmp.eq.s32.totalorder %s79, 0
    %s82 = sadd.s32 %s81, 1
    %s83 = scalar_select %p80, %s81, %s82
    %p86 = pneg %p80
    %p87 = scmp.eq.s32.totalorder %s24, 1
    %p88 = por %p86, %p87
    %p89 = scmp.ne.s32.totalorder %s81, %s84
    %p90 = scmp.eq.s32.totalorder %s24, 0
    %p91 = por %p89, %p90
    %p92 = scmp.ne.s32.totalorder %s81, %s84
    %p93 = scmp.eq.s32.totalorder %s29, 1
    %p94 = por %p92, %p93
    %p95 = scmp.ne.s32.totalorder %s84, %s85
    %p96 = scmp.eq.s32.totalorder %s29, 0
    %p97 = por %p95, %p96
    %p98 = scmp.ne.s32.totalorder %s84, %s85
    %p99 = scmp.eq.s32.totalorder %s30, 1
    %p100 = por %p98, %p99
    %p102 = scmp.ne.s32.totalorder %s85, %s101
    %p103 = scmp.eq.s32.totalorder %s30, 0
    %p104 = por %p102, %p103
    %s105 = ssub.s32 %s24, %s31
    %p106 = scmp.eq.s32.totalorder %s105, 0
    %s108 = sadd.s32 %s107, 1
    %s109 = scalar_select %p106, %s107, %s108
    %p112 = pneg %p106
    %p113 = scmp.eq.s32.totalorder %s24, 1
    %p114 = por %p112, %p113
    %p115 = scmp.ne.s32.totalorder %s107, %s110
    %p116 = scmp.eq.s32.totalorder %s24, 0
    %p117 = por %p115, %p116
    %p118 = scmp.ne.s32.totalorder %s107, %s110
    %p119 = scmp.eq.s32.totalorder %s29, 1
    %p120 = por %p118, %p119
    %p121 = scmp.ne.s32.totalorder %s110, %s111
    %p122 = scmp.eq.s32.totalorder %s29, 0
    %p123 = por %p121, %p122
    %p124 = scmp.ne.s32.totalorder %s110, %s111
    %p125 = scmp.eq.s32.totalorder %s30, 1
    %p126 = por %p124, %p125
    %p128 = scmp.ne.s32.totalorder %s111, %s127
    %p129 = scmp.eq.s32.totalorder %s30, 0
    %p130 = por %p128, %p129
    %s131 = ssub.s32 %s24, %s31
    %p132 = scmp.eq.s32.totalorder %s131, 0
    %s134 = sadd.s32 %s133, 1
    %s135 = scalar_select %p132, %s133, %s134
    %p138 = pneg %p132
    %p139 = scmp.eq.s32.totalorder %s24, 1
    %p140 = por %p138, %p139
    %p141 = scmp.ne.s32.totalorder %s133, %s136
    %p142 = scmp.eq.s32.totalorder %s24, 0
    %p143 = por %p141, %p142
    %p144 = scmp.ne.s32.totalorder %s133, %s136
    %p145 = scmp.eq.s32.totalorder %s29, 1
    %p146 = por %p144, %p145
    %p147 = scmp.ne.s32.totalorder %s136, %s137
    %p148 = scmp.eq.s32.totalorder %s29, 0
    %p149 = por %p147, %p148
    %p150 = scmp.ne.s32.totalorder %s136, %s137
    %p151 = scmp.eq.s32.totalorder %s30, 1
    %p152 = por %p150, %p151
    %p154 = scmp.ne.s32.totalorder %s137, %s153
    %p155 = scmp.eq.s32.totalorder %s30, 0
    %p156 = por %p154, %p155
    %s157 = ssub.s32 %s24, %s31
    %p158 = scmp.eq.s32.totalorder %s157, 0
    %s160 = sadd.s32 %s159, 1
    %s161 = scalar_select %p158, %s159, %s160
    %p164 = pneg %p158
    %p165 = scmp.eq.s32.totalorder %s24, 1
    %p166 = por %p164, %p165
    %p167 = scmp.ne.s32.totalorder %s159, %s162
    %p168 = scmp.eq.s32.totalorder %s24, 0
    %p169 = por %p167, %p168
    %p170 = scmp.ne.s32.totalorder %s159, %s162
    %p171 = scmp.eq.s32.totalorder %s29, 1
    %p172 = por %p170, %p171
    %p173 = scmp.ne.s32.totalorder %s162, %s163
    %p174 = scmp.eq.s32.totalorder %s29, 0
    %p175 = por %p173, %p174
    %p176 = scmp.ne.s32.totalorder %s162, %s163
    %p177 = scmp.eq.s32.totalorder %s30, 1
    %p178 = por %p176, %p177
    %p180 = scmp.ne.s32.totalorder %s163, %s179
    %p181 = scmp.eq.s32.totalorder %s30, 0
    %p182 = por %p180, %p181
    %s183 = ssub.s32 %s24, %s31
    %p184 = scmp.eq.s32.totalorder %s183, 0
    %s186 = sadd.s32 %s185, 1
    %s187 = scalar_select %p184, %s185, %s186
    %p190 = pneg %p184
    %p191 = scmp.eq.s32.totalorder %s24, 1
    %p192 = por %p190, %p191
    %p193 = scmp.ne.s32.totalorder %s185, %s188
    %p194 = scmp.eq.s32.totalorder %s24, 0
    %p195 = por %p193, %p194
    %p196 = scmp.ne.s32.totalorder %s185, %s188
    %p197 = scmp.eq.s32.totalorder %s29, 1
    %p198 = por %p196, %p197
    %p199 = scmp.ne.s32.totalorder %s188, %s189
    %p200 = scmp.eq.s32.totalorder %s29, 0
    %p201 = por %p199, %p200
    %p202 = scmp.ne.s32.totalorder %s188, %s189
    %p203 = scmp.eq.s32.totalorder %s30, 1
    %p204 = por %p202, %p203
    %p206 = scmp.ne.s32.totalorder %s189, %s205
    %p207 = scmp.eq.s32.totalorder %s30, 0
    %p208 = por %p206, %p207
    %s209 = ssub.s32 %s24, %s31
    %p210 = scmp.eq.s32.totalorder %s209, 0
    %s212 = sadd.s32 %s211, 1
    %s213 = scalar_select %p210, %s211, %s212
    %p216 = pneg %p210
    %p217 = scmp.eq.s32.totalorder %s24, 1
    %p218 = por %p216, %p217
    %p219 = scmp.ne.s32.totalorder %s211, %s214
    %p220 = scmp.eq.s32.totalorder %s24, 0
    %p221 = por %p219, %p220
    %p222 = scmp.ne.s32.totalorder %s211, %s214
    %p223 = scmp.eq.s32.totalorder %s29, 1
    %p224 = por %p222, %p223
    %p225 = scmp.ne.s32.totalorder %s214, %s215
    %p226 = scmp.eq.s32.totalorder %s29, 0
    %p227 = por %p225, %p226
    %p228 = scmp.ne.s32.totalorder %s214, %s215
    %p229 = scmp.eq.s32.totalorder %s30, 1
    %p230 = por %p228, %p229
    %p232 = scmp.ne.s32.totalorder %s215, %s231
    %p233 = scmp.eq.s32.totalorder %s30, 0
    %p234 = por %p232, %p233
    %s235 = ssub.s32 %s24, %s31
    %p236 = scmp.eq.s32.totalorder %s235, 0
    %s238 = sadd.s32 %s237, 1
    %s239 = scalar_select %p236, %s237, %s238
    %p242 = pneg %p236
    %p243 = scmp.eq.s32.totalorder %s24, 1
    %p244 = por %p242, %p243
    %p245 = scmp.ne.s32.totalorder %s237, %s240
    %p246 = scmp.eq.s32.totalorder %s24, 0
    %p247 = por %p245, %p246
    %p248 = scmp.ne.s32.totalorder %s237, %s240
    %p249 = scmp.eq.s32.totalorder %s29, 1
    %p250 = por %p248, %p249
    %p251 = scmp.ne.s32.totalorder %s240, %s241
    %p252 = scmp.eq.s32.totalorder %s29, 0
    %p253 = por %p251, %p252
    %p254 = scmp.ne.s32.totalorder %s240, %s241
    %p255 = scmp.eq.s32.totalorder %s30, 1
    %p256 = por %p254, %p255
    %p258 = scmp.ne.s32.totalorder %s241, %s257
    %p259 = scmp.eq.s32.totalorder %s30, 0
    %p260 = por %p258, %p259
    %s261 = ssub.s32 %s24, %s31
    %p262 = scmp.eq.s32.totalorder %s261, 0
    %s264 = sadd.s32 %s263, 1
    %s265 = scalar_select %p262, %s263, %s264
    %p268 = pneg %p262
    %p269 = scmp.eq.s32.totalorder %s24, 1
    %p270 = por %p268, %p269
    %p271 = scmp.ne.s32.totalorder %s263, %s266
    %p272 = scmp.eq.s32.totalorder %s24, 0
    %p273 = por %p271, %p272
    %p274 = scmp.ne.s32.totalorder %s263, %s266
    %p275 = scmp.eq.s32.totalorder %s29, 1
    %p276 = por %p274, %p275
    %p277 = scmp.ne.s32.totalorder %s266, %s267
    %p278 = scmp.eq.s32.totalorder %s29, 0
    %p279 = por %p277, %p278
    %p280 = scmp.ne.s32.totalorder %s266, %s267
    %p281 = scmp.eq.s32.totalorder %s30, 1
    %p282 = por %p280, %p281
    %p284 = scmp.ne.s32.totalorder %s267, %s283
    %p285 = scmp.eq.s32.totalorder %s30, 0
    %p286 = por %p284, %p285
    %s287 = ssub.s32 %s24, %s31
    %p288 = scmp.eq.s32.totalorder %s287, 0
    %s290 = sadd.s32 %s289, 1
    %s291 = scalar_select %p288, %s289, %s290
    %p294 = pneg %p288
    %p295 = scmp.eq.s32.totalorder %s24, 1
    %p296 = por %p294, %p295
    %p297 = scmp.ne.s32.totalorder %s289, %s292
    %p298 = scmp.eq.s32.totalorder %s24, 0
    %p299 = por %p297, %p298
    %p300 = scmp.ne.s32.totalorder %s289, %s292
    %p301 = scmp.eq.s32.totalorder %s29, 1
    %p302 = por %p300, %p301
    %p303 = scmp.ne.s32.totalorder %s292, %s293
    %p304 = scmp.eq.s32.totalorder %s29, 0
    %p305 = por %p303, %p304
    %p306 = scmp.ne.s32.totalorder %s292, %s293
    %p307 = scmp.eq.s32.totalorder %s30, 1
    %p308 = por %p306, %p307
    %p310 = scmp.ne.s32.totalorder %s293, %s309
    %p311 = scmp.eq.s32.totalorder %s30, 0
    %p312 = por %p310, %p311
    %s313 = ssub.s32 %s24, %s31
    %p314 = scmp.eq.s32.totalorder %s313, 0
    %s316 = sadd.s32 %s315, 1
    %s317 = scalar_select %p314, %s315, %s316
    %p320 = pneg %p314
    %p321 = scmp.eq.s32.totalorder %s24, 1
    %p322 = por %p320, %p321
    %p323 = scmp.ne.s32.totalorder %s315, %s318
    %p324 = scmp.eq.s32.totalorder %s24, 0
    %p325 = por %p323, %p324
    %p326 = scmp.ne.s32.totalorder %s315, %s318
    %p327 = scmp.eq.s32.totalorder %s29, 1
    %p328 = por %p326, %p327
    %p329 = scmp.ne.s32.totalorder %s318, %s319
    %p330 = scmp.eq.s32.totalorder %s29, 0
    %p331 = por %p329, %p330
    %p332 = scmp.ne.s32.totalorder %s318, %s319
    %p333 = scmp.eq.s32.totalorder %s30, 1
    %p334 = por %p332, %p333
    %p336 = scmp.ne.s32.totalorder %s319, %s335
    %p337 = scmp.eq.s32.totalorder %s30, 0
    %p338 = por %p336, %p337
    %s339 = ssub.s32 %s24, %s31
    %p340 = scmp.eq.s32.totalorder %s339, 0
    %s342 = sadd.s32 %s341, 1
    %s343 = scalar_select %p340, %s341, %s342
    %p346 = pneg %p340
    %p347 = scmp.eq.s32.totalorder %s24, 1
    %p348 = por %p346, %p347
    %p349 = scmp.ne.s32.totalorder %s341, %s344
    %p350 = scmp.eq.s32.totalorder %s24, 0
    %p351 = por %p349, %p350
    %p352 = scmp.ne.s32.totalorder %s341, %s344
    %p353 = scmp.eq.s32.totalorder %s29, 1
    %p354 = por %p352, %p353
    %p355 = scmp.ne.s32.totalorder %s344, %s345
    %p356 = scmp.eq.s32.totalorder %s29, 0
    %p357 = por %p355, %p356
    %p358 = scmp.ne.s32.totalorder %s344, %s345
    %p359 = scmp.eq.s32.totalorder %s30, 1
    %p360 = por %p358, %p359
    %p362 = scmp.ne.s32.totalorder %s345, %s361
    %p363 = scmp.eq.s32.totalorder %s30, 0
    %p364 = por %p362, %p363
    %s365 = ssub.s32 %s24, %s31
    %p366 = scmp.eq.s32.totalorder %s365, 0
    %s368 = sadd.s32 %s367, 1
    %s369 = scalar_select %p366, %s367, %s368
    %p372 = pneg %p366
    %p373 = scmp.eq.s32.totalorder %s24, 1
    %p374 = por %p372, %p373
    %p375 = scmp.ne.s32.totalorder %s367, %s370
    %p376 = scmp.eq.s32.totalorder %s24, 0
    %p377 = por %p375, %p376
    %p378 = scmp.ne.s32.totalorder %s367, %s370
    %p379 = scmp.eq.s32.totalorder %s29, 1
    %p380 = por %p378, %p379
    %p381 = scmp.ne.s32.totalorder %s370, %s371
    %p382 = scmp.eq.s32.totalorder %s29, 0
    %p383 = por %p381, %p382
    %p384 = scmp.ne.s32.totalorder %s370, %s371
    %p385 = scmp.eq.s32.totalorder %s30, 1
    %p386 = por %p384, %p385
    %p388 = scmp.ne.s32.totalorder %s371, %s387
    %p389 = scmp.eq.s32.totalorder %s30, 0
    %p390 = por %p388, %p389
    %s392 = sadd.s32 %s391, 1
    %p395 = scmp.eq.s32.totalorder %s24, 1
    %p396 = scmp.ne.s32.totalorder %s391, %s393
    %p397 = scmp.eq.s32.totalorder %s24, 0
    %p398 = por %p396, %p397
    %p399 = scmp.ne.s32.totalorder %s391, %s393
    %p400 = scmp.eq.s32.totalorder %s29, 1
    %p401 = por %p399, %p400
    %p402 = scmp.ne.s32.totalorder %s393, %s394
    %p403 = scmp.eq.s32.totalorder %s29, 0
    %p404 = por %p402, %p403
    %p405 = scmp.ne.s32.totalorder %s393, %s394
    %p406 = scmp.eq.s32.totalorder %s30, 1
    %p407 = por %p405, %p406
    %p409 = scmp.ne.s32.totalorder %s394, %s408
    %p410 = scmp.eq.s32.totalorder %s30, 0
    %p411 = por %p409, %p410
    %s413 = sadd.s32 %s412, 1
    %p416 = scmp.eq.s32.totalorder %s24, 1
    %p417 = scmp.ne.s32.totalorder %s412, %s414
    %p418 = scmp.eq.s32.totalorder %s24, 0
    %p419 = por %p417, %p418
    %p420 = scmp.ne.s32.totalorder %s412, %s414
    %p421 = scmp.eq.s32.totalorder %s29, 1
    %p422 = por %p420, %p421
    %p423 = scmp.ne.s32.totalorder %s414, %s415
    %p424 = scmp.eq.s32.totalorder %s29, 0
    %p425 = por %p423, %p424
    %p426 = scmp.ne.s32.totalorder %s414, %s415
    %p427 = scmp.eq.s32.totalorder %s30, 1
    %p428 = por %p426, %p427
    %p430 = scmp.ne.s32.totalorder %s415, %s429
    %p431 = scmp.eq.s32.totalorder %s30, 0
    %p432 = por %p430, %p431
    %s434 = sadd.s32 %s433, 1
    %p437 = scmp.eq.s32.totalorder %s24, 1
    %p438 = scmp.ne.s32.totalorder %s433, %s435
    %p439 = scmp.eq.s32.totalorder %s24, 0
    %p440 = por %p438, %p439
    %p441 = scmp.ne.s32.totalorder %s433, %s435
    %p442 = scmp.eq.s32.totalorder %s29, 1
    %p443 = por %p441, %p442
    %p444 = scmp.ne.s32.totalorder %s435, %s436
    %p445 = scmp.eq.s32.totalorder %s29, 0
    %p446 = por %p444, %p445
    %p447 = scmp.ne.s32.totalorder %s435, %s436
    %p448 = scmp.eq.s32.totalorder %s30, 1
    %p449 = por %p447, %p448
    %p451 = scmp.ne.s32.totalorder %s436, %s450
    %p452 = scmp.eq.s32.totalorder %s30, 0
    %p453 = por %p451, %p452
    %s455 = sadd.s32 %s454, 1
    %p458 = scmp.eq.s32.totalorder %s24, 1
    %p459 = scmp.ne.s32.totalorder %s454, %s456
    %p460 = scmp.eq.s32.totalorder %s24, 0
    %p461 = por %p459, %p460
    %p462 = scmp.ne.s32.totalorder %s454, %s456
    %p463 = scmp.eq.s32.totalorder %s29, 1
    %p464 = por %p462, %p463
    %p465 = scmp.ne.s32.totalorder %s456, %s457
    %p466 = scmp.eq.s32.totalorder %s29, 0
    %p467 = por %p465, %p466
    %p468 = scmp.ne.s32.totalorder %s456, %s457
    %p469 = scmp.eq.s32.totalorder %s30, 1
    %p470 = por %p468, %p469
    %p472 = scmp.ne.s32.totalorder %s457, %s471
    %p473 = scmp.eq.s32.totalorder %s30, 0
    %p474 = por %p472, %p473
    %s475 = ssub.s32 %s24, %s31
    %p476 = scmp.eq.s32.totalorder %s475, 0
    %s478 = sadd.s32 %s477, 1
    %s479 = scalar_select %p476, %s477, %s478
    %p482 = pneg %p476
    %p483 = scmp.eq.s32.totalorder %s24, 1
    %p484 = por %p482, %p483
    %p485 = scmp.ne.s32.totalorder %s477, %s480
    %p486 = scmp.eq.s32.totalorder %s24, 0
    %p487 = por %p485, %p486
    %p488 = scmp.ne.s32.totalorder %s477, %s480
    %p489 = scmp.eq.s32.totalorder %s29, 1
    %p490 = por %p488, %p489
    %p491 = scmp.ne.s32.totalorder %s480, %s481
    %p492 = scmp.eq.s32.totalorder %s29, 0
    %p493 = por %p491, %p492
    %p494 = scmp.ne.s32.totalorder %s480, %s481
    %p495 = scmp.eq.s32.totalorder %s30, 1
    %p496 = por %p494, %p495
    %p498 = scmp.ne.s32.totalorder %s481, %s497
    %p499 = scmp.eq.s32.totalorder %s30, 0
    %p500 = por %p498, %p499
    %p501 = scmp.le.s32.totalorder 1, %s24
    %p502 = scmp.lt.s32.totalorder %s24, 3
    %p503 = pnand %p501, %p502
    %p504 = pneg %p503
    // Predicated region
    $region9: #{dboostree_forward.1} parent=5 // pred_check
      _
    $region10: #{dboostree_forward.1} parent=5 // pred_check_branch
      %506 = sbr.rel (%p503) target = $region12
    $region11: #{dboostree_forward.1} parent=5 // pred_region
      %s507 = ssub.s32 %s24, 1
      // Predicated region
      $region13: #{dboostree_forward.1} parent=11 // pred_check
        %p508 = pneg %p45
      $region14: #{dboostree_forward.1} parent=11 // pred_check_branch
        %510 = sbr.rel (%p508) target = $region16
      $region15: #{dboostree_forward.1} parent=11 // pred_region
        _
      $region16: #{dboostree_forward.1} parent=11 // pred_fallthru
        _
      // Predicated region
      $region17: #{dboostree_forward.1} parent=11 // pred_check
        %p511 = pneg %p404
      $region18: #{dboostree_forward.1} parent=11 // pred_check_branch
        %513 = sbr.rel (%p511) target = $region20
      $region19: #{dboostree_forward.1} parent=11 // pred_region
        _
      $region20: #{dboostree_forward.1} parent=11 // pred_fallthru
        _
      // Predicated region
      $region21: #{dboostree_forward.1} parent=11 // pred_check
        %p514 = pneg %p425
      $region22: #{dboostree_forward.1} parent=11 // pred_check_branch
        %516 = sbr.rel (%p514) target = $region24
      $region23: #{dboostree_forward.1} parent=11 // pred_region
        _
      $region24: #{dboostree_forward.1} parent=11 // pred_fallthru
        _
      // Predicated region
      $region25: #{dboostree_forward.1} parent=11 // pred_check
        %p517 = pneg %p446
      $region26: #{dboostree_forward.1} parent=11 // pred_check_branch
        %519 = sbr.rel (%p517) target = $region28
      $region27: #{dboostree_forward.1} parent=11 // pred_region
        _
      $region28: #{dboostree_forward.1} parent=11 // pred_fallthru
        _
      // Predicated region
      $region29: #{dboostree_forward.1} parent=11 // pred_check
        %p520 = pneg %p467
      $region30: #{dboostree_forward.1} parent=11 // pred_check_branch
        %522 = sbr.rel (%p520) target = $region32
      $region31: #{dboostree_forward.1} parent=11 // pred_region
        _
      $region32: #{dboostree_forward.1} parent=11 // pred_fallthru
        _
    $region12: #{dboostree_forward.1} parent=5 // pred_fallthru
      _
    %p523 = scmp.lt.s32.totalorder %s24, 2
    // Predicated region
    $region33: #{dboostree_forward.1} parent=5 // pred_check
      %p524 = pneg %p523
    $region34: #{dboostree_forward.1} parent=5 // pred_check_branch
      %526 = sbr.rel (%p524) target = $region36
    $region35: #{dboostree_forward.1} parent=5 // pred_region
      // Predicated region
      $region37: #{dboostree_forward.1} parent=35 // pred_check
        %p527 = pneg %p65
      $region38: #{dboostree_forward.1} parent=35 // pred_check_branch
        %529 = sbr.rel (%p527) target = $region40
      $region39: #{dboostree_forward.1} parent=35 // pred_region
        %p530 = scmp.lt.s32.totalorder %s24, 1
        %s531 = scalar_select %p530, %s24, 1
        %s532 = smul.addr %s531, 16
        %s533 = smul.addr %s532, 8
        %s534 = scalar_lea.vmem %s1, %s533
      $region40: #{dboostree_forward.1} parent=35 // pred_fallthru
        _
      // Predicated region
      $region41: #{dboostree_forward.1} parent=35 // pred_check
        %p535 = pneg %p91
      $region42: #{dboostree_forward.1} parent=35 // pred_check_branch
        %537 = sbr.rel (%p535) target = $region44
      $region43: #{dboostree_forward.1} parent=35 // pred_region
        %p538 = scmp.lt.s32.totalorder %s24, 1
        %s539 = scalar_select %p538, %s24, 1
        %s540 = smul.addr %s539, 8
        %s541 = scalar_lea.vmem %s2, %s540
      $region44: #{dboostree_forward.1} parent=35 // pred_fallthru
        _
      // Predicated region
      $region45: #{dboostree_forward.1} parent=35 // pred_check
        %p542 = pneg %p117
      $region46: #{dboostree_forward.1} parent=35 // pred_check_branch
        %544 = sbr.rel (%p542) target = $region48
      $region47: #{dboostree_forward.1} parent=35 // pred_region
        %p545 = scmp.lt.s32.totalorder %s24, 1
        %s546 = scalar_select %p545, %s24, 1
        %s547 = scalar_lea.vmem %s3, %s546
      $region48: #{dboostree_forward.1} parent=35 // pred_fallthru
        _
      // Predicated region
      $region49: #{dboostree_forward.1} parent=35 // pred_check
        %p548 = pneg %p143
      $region50: #{dboostree_forward.1} parent=35 // pred_check_branch
        %550 = sbr.rel (%p548) target = $region52
      $region51: #{dboostree_forward.1} parent=35 // pred_region
        %p551 = scmp.lt.s32.totalorder %s24, 1
        %s552 = scalar_select %p551, %s24, 1
        %s553 = smul.addr %s552, 8
        %s554 = smul.addr %s553, 8
        %s555 = scalar_lea.vmem %s4, %s554
      $region52: #{dboostree_forward.1} parent=35 // pred_fallthru
        _
      // Predicated region
      $region53: #{dboostree_forward.1} parent=35 // pred_check
        %p556 = pneg %p169
      $region54: #{dboostree_forward.1} parent=35 // pred_check_branch
        %558 = sbr.rel (%p556) target = $region56
      $region55: #{dboostree_forward.1} parent=35 // pred_region
        %p559 = scmp.lt.s32.totalorder %s24, 1
        %s560 = scalar_select %p559, %s24, 1
        %s561 = smul.addr %s560, 2
        %s562 = scalar_lea.vmem %s5, %s561
      $region56: #{dboostree_forward.1} parent=35 // pred_fallthru
        _
      // Predicated region
      $region57: #{dboostree_forward.1} parent=35 // pred_check
        %p563 = pneg %p195
      $region58: #{dboostree_forward.1} parent=35 // pred_check_branch
        %565 = sbr.rel (%p563) target = $region60
      $region59: #{dboostree_forward.1} parent=35 // pred_region
        %p566 = scmp.lt.s32.totalorder %s24, 1
        %s567 = scalar_select %p566, %s24, 1
        %s568 = smul.addr %s567, 4
        %s569 = smul.addr %s568, 8
        %s570 = scalar_lea.vmem %s6, %s569
      $region60: #{dboostree_forward.1} parent=35 // pred_fallthru
        _
      // Predicated region
      $region61: #{dboostree_forward.1} parent=35 // pred_check
        %p571 = pneg %p221
      $region62: #{dboostree_forward.1} parent=35 // pred_check_branch
        %573 = sbr.rel (%p571) target = $region64
      $region63: #{dboostree_forward.1} parent=35 // pred_region
        %p574 = scmp.lt.s32.totalorder %s24, 1
        %s575 = scalar_select %p574, %s24, 1
        %s576 = scalar_lea.vmem %s7, %s575
      $region64: #{dboostree_forward.1} parent=35 // pred_fallthru
        _
      // Predicated region
      $region65: #{dboostree_forward.1} parent=35 // pred_check
        %p577 = pneg %p247
      $region66: #{dboostree_forward.1} parent=35 // pred_check_branch
        %579 = sbr.rel (%p577) target = $region68
      $region67: #{dboostree_forward.1} parent=35 // pred_region
        %p580 = scmp.lt.s32.totalorder %s24, 1
        %s581 = scalar_select %p580, %s24, 1
        %s582 = smul.addr %s581, 5
        %s583 = smul.addr %s582, 8
        %s584 = scalar_lea.vmem %s8, %s583
      $region68: #{dboostree_forward.1} parent=35 // pred_fallthru
        _
      // Predicated region
      $region69: #{dboostree_forward.1} parent=35 // pred_check
        %p585 = pneg %p273
      $region70: #{dboostree_forward.1} parent=35 // pred_check_branch
        %587 = sbr.rel (%p585) target = $region72
      $region71: #{dboostree_forward.1} parent=35 // pred_region
        %p588 = scmp.lt.s32.totalorder %s24, 1
        %s589 = scalar_select %p588, %s24, 1
        %s590 = smul.addr %s589, 10
        %s591 = smul.addr %s590, 8
        %s592 = scalar_lea.vmem %s9, %s591
      $region72: #{dboostree_forward.1} parent=35 // pred_fallthru
        _
      // Predicated region
      $region73: #{dboostree_forward.1} parent=35 // pred_check
        %p593 = pneg %p299
      $region74: #{dboostree_forward.1} parent=35 // pred_check_branch
        %595 = sbr.rel (%p593) target = $region76
      $region75: #{dboostree_forward.1} parent=35 // pred_region
        %p596 = scmp.lt.s32.totalorder %s24, 1
        %s597 = scalar_select %p596, %s24, 1
        %s598 = smul.addr %s597, 2
        %s599 = scalar_lea.vmem %s10, %s598
      $region76: #{dboostree_forward.1} parent=35 // pred_fallthru
        _
      // Predicated region
      $region77: #{dboostree_forward.1} parent=35 // pred_check
        %p600 = pneg %p325
      $region78: #{dboostree_forward.1} parent=35 // pred_check_branch
        %602 = sbr.rel (%p600) target = $region80
      $region79: #{dboostree_forward.1} parent=35 // pred_region
        %p603 = scmp.lt.s32.totalorder %s24, 1
        %s604 = scalar_select %p603, %s24, 1
        %s605 = smul.addr %s604, 4
        %s606 = smul.addr %s605, 8
        %s607 = scalar_lea.vmem %s11, %s606
      $region80: #{dboostree_forward.1} parent=35 // pred_fallthru
        _
      // Predicated region
      $region81: #{dboostree_forward.1} parent=35 // pred_check
        %p608 = pneg %p351
      $region82: #{dboostree_forward.1} parent=35 // pred_check_branch
        %610 = sbr.rel (%p608) target = $region84
      $region83: #{dboostree_forward.1} parent=35 // pred_region
        %p611 = scmp.lt.s32.totalorder %s24, 1
        %s612 = scalar_select %p611, %s24, 1
        %s613 = scalar_lea.vmem %s12, %s612
      $region84: #{dboostree_forward.1} parent=35 // pred_fallthru
        _
      // Predicated region
      $region85: #{dboostree_forward.1} parent=35 // pred_check
        %p614 = pneg %p377
      $region86: #{dboostree_forward.1} parent=35 // pred_check_branch
        %616 = sbr.rel (%p614) target = $region88
      $region87: #{dboostree_forward.1} parent=35 // pred_region
        %p617 = scmp.lt.s32.totalorder %s24, 1
        %s618 = scalar_select %p617, %s24, 1
        %s619 = smul.addr %s618, 16
        %s620 = smul.addr %s619, 8
        %s621 = scalar_lea.vmem %s13, %s620
      $region88: #{dboostree_forward.1} parent=35 // pred_fallthru
        _
    $region36: #{dboostree_forward.1} parent=5 // pred_fallthru
      _
    %p622 = scmp.le.s32.totalorder 1, %s24
    %p623 = scmp.lt.s32.totalorder %s24, 3
    %p624 = pnand %p622, %p623
    %p625 = pneg %p624
    // Predicated region
    $region89: #{dboostree_forward.1} parent=5 // pred_check
      _
    $region90: #{dboostree_forward.1} parent=5 // pred_check_branch
      %627 = sbr.rel (%p624) target = $region92
    $region91: #{dboostree_forward.1} parent=5 // pred_region
      %s628 = ssub.s32 %s24, 1
      %p629 = pneg %p45
      %p630 = pneg %p42
      %p631 = scmp.lt.s32.totalorder %s29, 1
      %s632 = scalar_select %p631, %s29, 1
      %s633 = smul.addr %s632, 16
      %s634 = smul.addr %s633, 8
      %s635 = scalar_lea.vmem %s1, %s634
      %p636 = pneg %p71
      %p637 = pneg %p68
      %p638 = scmp.lt.s32.totalorder %s29, 1
      %s639 = scalar_select %p638, %s29, 1
      %s640 = smul.addr %s639, 8
      %s641 = scalar_lea.vmem %s2, %s640
      %p642 = pneg %p97
      %p643 = pneg %p94
      %p644 = scmp.lt.s32.totalorder %s29, 1
      %s645 = scalar_select %p644, %s29, 1
      %s646 = scalar_lea.vmem %s3, %s645
      %p647 = pneg %p123
      %p648 = pneg %p120
      %p649 = scmp.lt.s32.totalorder %s29, 1
      %s650 = scalar_select %p649, %s29, 1
      %s651 = smul.addr %s650, 8
      %s652 = smul.addr %s651, 8
      %s653 = scalar_lea.vmem %s4, %s652
      %p654 = pneg %p149
      %p655 = pneg %p146
      %p656 = scmp.lt.s32.totalorder %s29, 1
      %s657 = scalar_select %p656, %s29, 1
      %s658 = smul.addr %s657, 2
      %s659 = scalar_lea.vmem %s5, %s658
      %p660 = pneg %p175
      %p661 = pneg %p172
      %p662 = scmp.lt.s32.totalorder %s29, 1
      %s663 = scalar_select %p662, %s29, 1
      %s664 = smul.addr %s663, 4
      %s665 = smul.addr %s664, 8
      %s666 = scalar_lea.vmem %s6, %s665
      %p667 = pneg %p201
      %p668 = pneg %p198
      %p669 = scmp.lt.s32.totalorder %s29, 1
      %s670 = scalar_select %p669, %s29, 1
      %s671 = scalar_lea.vmem %s7, %s670
      %p672 = pneg %p227
      %p673 = pneg %p224
      %p674 = scmp.lt.s32.totalorder %s29, 1
      %s675 = scalar_select %p674, %s29, 1
      %s676 = smul.addr %s675, 5
      %s677 = smul.addr %s676, 8
      %s678 = scalar_lea.vmem %s8, %s677
      %p679 = pneg %p253
      %p680 = pneg %p250
      %p681 = scmp.lt.s32.totalorder %s29, 1
      %s682 = scalar_select %p681, %s29, 1
      %s683 = smul.addr %s682, 10
      %s684 = smul.addr %s683, 8
      %s685 = scalar_lea.vmem %s9, %s684
      %p686 = pneg %p279
      %p687 = pneg %p276
      %p688 = scmp.lt.s32.totalorder %s29, 1
      %s689 = scalar_select %p688, %s29, 1
      %s690 = smul.addr %s689, 2
      %s691 = scalar_lea.vmem %s10, %s690
      %p692 = pneg %p305
      %p693 = pneg %p302
      %p694 = scmp.lt.s32.totalorder %s29, 1
      %s695 = scalar_select %p694, %s29, 1
      %s696 = smul.addr %s695, 4
      %s697 = smul.addr %s696, 8
      %s698 = scalar_lea.vmem %s11, %s697
      %p699 = pneg %p331
      %p700 = pneg %p328
      %p701 = scmp.lt.s32.totalorder %s29, 1
      %s702 = scalar_select %p701, %s29, 1
      %s703 = scalar_lea.vmem %s12, %s702
      %p704 = pneg %p357
      %p705 = pneg %p354
      %p706 = scmp.lt.s32.totalorder %s29, 1
      %s707 = scalar_select %p706, %s29, 1
      %s708 = smul.addr %s707, 16
      %s709 = smul.addr %s708, 8
      %s710 = scalar_lea.vmem %s13, %s709
      %p711 = pneg %p383
      %p712 = pneg %p380
      %p713 = pneg %p404
      %p714 = pneg %p401
      %p715 = pneg %p425
      %p716 = pneg %p422
      %p717 = pneg %p446
      %p718 = pneg %p443
      %p719 = pneg %p467
      %p720 = pneg %p464
      %p721 = pneg %p493
      %p722 = pneg %p490
      %p723 = scmp.lt.s32.totalorder %s29, 1
      %s724 = scalar_select %p723, %s29, 1
      %s725 = smul.addr %s724, 8
      %s726 = scalar_lea.vmem %s18, %s725
      %p727 = scmp.lt.s32.totalorder %s29, 1
      %s728 = scalar_select %p727, %s29, 1
      %s729 = smul.addr %s728, 16
      %s730 = smul.addr %s729, 8
      %s731 = scalar_lea.vmem %s1, %s730
      %p732 = scmp.lt.s32.totalorder %s29, 1
      %s733 = scalar_select %p732, %s29, 1
      %s734 = smul.addr %s733, 8
      %s735 = scalar_lea.vmem %s2, %s734
      %p736 = scmp.lt.s32.totalorder %s29, 1
      %s737 = scalar_select %p736, %s29, 1
      %s738 = scalar_lea.vmem %s3, %s737
      %p739 = scmp.lt.s32.totalorder %s29, 1
      %s740 = scalar_select %p739, %s29, 1
      %s741 = smul.addr %s740, 8
      %s742 = smul.addr %s741, 8
      %s743 = scalar_lea.vmem %s4, %s742
      %p744 = scmp.lt.s32.totalorder %s29, 1
      %s745 = scalar_select %p744, %s29, 1
      %s746 = smul.addr %s745, 2
      %s747 = scalar_lea.vmem %s5, %s746
      %p748 = scmp.lt.s32.totalorder %s29, 1
      %s749 = scalar_select %p748, %s29, 1
      %s750 = smul.addr %s749, 4
      %s751 = smul.addr %s750, 8
      %s752 = scalar_lea.vmem %s6, %s751
      %p753 = scmp.lt.s32.totalorder %s29, 1
      %s754 = scalar_select %p753, %s29, 1
      %s755 = scalar_lea.vmem %s7, %s754
      %p756 = scmp.lt.s32.totalorder %s29, 1
      %s757 = scalar_select %p756, %s29, 1
      %s758 = smul.addr %s757, 5
      %s759 = smul.addr %s758, 8
      %s760 = scalar_lea.vmem %s8, %s759
      %p761 = scmp.lt.s32.totalorder %s29, 1
      %s762 = scalar_select %p761, %s29, 1
      %s763 = smul.addr %s762, 10
      %s764 = smul.addr %s763, 8
      %s765 = scalar_lea.vmem %s9, %s764
      %p766 = scmp.lt.s32.totalorder %s29, 1
      %s767 = scalar_select %p766, %s29, 1
      %s768 = smul.addr %s767, 2
      %s769 = scalar_lea.vmem %s10, %s768
      %p770 = scmp.lt.s32.totalorder %s29, 1
      %s771 = scalar_select %p770, %s29, 1
      %s772 = smul.addr %s771, 4
      %s773 = smul.addr %s772, 8
      %s774 = scalar_lea.vmem %s11, %s773
      %p775 = scmp.lt.s32.totalorder %s29, 1
      %s776 = scalar_select %p775, %s29, 1
      %s777 = scalar_lea.vmem %s12, %s776
      %p778 = scmp.lt.s32.totalorder %s29, 1
      %s779 = scalar_select %p778, %s29, 1
      %s780 = smul.addr %s779, 16
      %s781 = smul.addr %s780, 8
      %s782 = scalar_lea.vmem %s13, %s781
      %p783 = scmp.lt.s32.totalorder %s29, 1
      %s784 = scalar_select %p783, %s29, 1
      %s785 = smul.addr %s784, 8
      %s786 = scalar_lea.vmem %s18, %s785
      %p787 = scmp.eq.s32.totalorder %s29, 0
      // Predicated region
      $region93: #{dboostree_forward.1} parent=91 // pred_check
        %p788 = pneg %p787
      $region94: #{dboostree_forward.1} parent=91 // pred_check_branch
        %790 = sbr.rel (%p788) target = $region96
      $region95: #{dboostree_forward.1} parent=91 // pred_region
        %791 = vst [vmem:[#allocation2] sm:$0xff] 0.0
        %vm792 = vcmask 64512
        %793 = vst.msk [vmem:[#allocation3] sm:$0xff] %vm792, 0.0
      $region96: #{dboostree_forward.1} parent=91 // pred_fallthru
        _
      %v794 = vld [vmem:[%s0] sm:$0xff]
      %v795 = vld [vmem:[%s731] sm:$0xff]
      %v796 = vld [vmem:[%s731 + $0x8] sm:$0xff]
      %v797 = vld [vmem:[%s731 + $0x10] sm:$0xff]
      %v798 = vld [vmem:[%s731 + $0x18] sm:$0xff]
      %v799 = vld [vmem:[%s731 + $0x20] sm:$0xff]
      %v800 = vld [vmem:[%s731 + $0x28] sm:$0xff]
      %v801 = vld [vmem:[%s731 + $0x30] sm:$0xff]
      %v802 = vld [vmem:[%s731 + $0x38] sm:$0xff]
      %v803 = vld [vmem:[%s731 + $0x40] sm:$0xff]
      %v804 = vld [vmem:[%s731 + $0x48] sm:$0xff]
      %v805 = vld [vmem:[%s731 + $0x50] sm:$0xff]
      %v806 = vld [vmem:[%s731 + $0x58] sm:$0xff]
      %v807 = vld [vmem:[%s731 + $0x60] sm:$0xff]
      %v808 = vld [vmem:[%s731 + $0x68] sm:$0xff]
      %v809 = vld [vmem:[%s731 + $0x70] sm:$0xff]
      %v810 = vld [vmem:[%s731 + $0x78] sm:$0xff]
      %v811 = vld [vmem:[#allocation3] sm:$0xff]
      %v812 = vld [vmem:[%s735] sm:$0xff]
      %vm813 = vcmask 64512
      %v815 = vsel %vm813, %v811, 0
      %817 = vmatprep.subr.mxu0 0.0
      %818 = vmatpush1.msra.mxu0 %v812
      %819 = vmatprep.subr.mxu0 0.0
      %820 = vmatpush1.msra.mxu0 0.0
      %821 = vmatprep.subr.mxu0 0.0
      %822 = vmatpush1.msra.mxu0 0.0
      %823 = vmatprep.subr.mxu0 0.0
      %824 = vmatpush1.msra.mxu0 0.0
      %825 = vmatprep.subr.mxu0 0.0
      %826 = vmatpush1.msra.mxu0 0.0
      %827 = vmatprep.subr.mxu0 0.0
      %828 = vmatpush1.msra.mxu0 0.0
      %829 = vmatprep.subr.mxu0 0.0
      %830 = vmatpush1.msra.mxu0 0.0
      %831 = vmatprep.subr.mxu0 0.0
      %832 = vmatpush1.msra.mxu0 0.0
      %833 = vmatprep.subr.mxu0 0.0
      %834 = vmatpush1.msra.mxu0 0.0
      %835 = vmatprep.subr.mxu0 0.0
      %836 = vmatpush1.msra.mxu0 0.0
      %837 = vmatprep.subr.mxu0 0.0
      %838 = vmatpush1.msra.mxu0 0.0
      %839 = vmatprep.subr.mxu0 0.0
      %840 = vmatpush1.msra.mxu0 0.0
      %841 = vmatprep.subr.mxu0 0.0
      %842 = vmatpush1.msra.mxu0 0.0
      %843 = vmatprep.subr.mxu0 0.0
      %844 = vmatpush1.msra.mxu0 0.0
      %845 = vmatprep.subr.mxu0 0.0
      %846 = vmatpush1.msra.mxu0 0.0
      %847 = vmatprep.subr.mxu0 0.0
      %848 = vmatpush1.msra.mxu0 0.0
      %849 = vmatprep.subr.mxu0 0.0
      %850 = vmatpush1.msra.mxu0 0.0
      %851 = vmatprep.subr.mxu0 0.0
      %852 = vmatpush1.msra.mxu0 0.0
      %853 = vmatprep.subr.mxu0 0.0
      %854 = vmatpush1.msra.mxu0 0.0
      %855 = vmatprep.subr.mxu0 0.0
      %856 = vmatpush1.msra.mxu0 0.0
      %857 = vmatprep.subr.mxu0 0.0
      %858 = vmatpush1.msra.mxu0 0.0
      %859 = vmatprep.subr.mxu0 0.0
      %860 = vmatpush1.msra.mxu0 0.0
      %861 = vmatprep.subr.mxu0 0.0
      %862 = vmatpush1.msra.mxu0 0.0
      %863 = vmatprep.subr.mxu0 0.0
      %864 = vmatpush1.msra.mxu0 0.0
      %865 = vmatprep.subr.mxu0 0.0
      %866 = vmatpush1.msra.mxu0 0.0
      %867 = vmatprep.subr.mxu0 0.0
      %868 = vmatpush1.msra.mxu0 0.0
      %869 = vmatprep.subr.mxu0 0.0
      %870 = vmatpush1.msra.mxu0 0.0
      %871 = vmatprep.subr.mxu0 0.0
      %872 = vmatpush1.msra.mxu0 0.0
      %873 = vmatprep.subr.mxu0 0.0
      %874 = vmatpush1.msra.mxu0 0.0
      %875 = vmatprep.subr.mxu0 0.0
      %876 = vmatpush1.msra.mxu0 0.0
      %877 = vmatprep.subr.mxu0 0.0
      %878 = vmatpush1.msra.mxu0 0.0
      %879 = vmatprep.subr.mxu0 0.0
      %880 = vmatpush1.msra.mxu0 0.0
      %881 = vmatprep.mubr.f32.mxu0 0.0
      %882 = vmatmul.mubr.f32.gmra.mrb[0].mxu0 %v815
      %v883 = vpop.f32.mrb[0].mxu0
      %v884 = vadd.f32 0.0, %v883
      %v885 = vpop.f32.mrb[0].mxu0
      %886 = vdwg.mxu0
      %887 = vmatprep.subr.mxu0 0.0
      %888 = vmatpush1.msra.mxu0 %v795
      %889 = vmatprep.subr.mxu0 0.0
      %890 = vmatpush1.msra.mxu0 %v796
      %891 = vmatprep.subr.mxu0 0.0
      %892 = vmatpush1.msra.mxu0 %v797
      %893 = vmatprep.subr.mxu0 0.0
      %894 = vmatpush1.msra.mxu0 %v798
      %895 = vmatprep.subr.mxu0 0.0
      %896 = vmatpush1.msra.mxu0 %v799
      %897 = vmatprep.subr.mxu0 0.0
      %898 = vmatpush1.msra.mxu0 %v800
      %899 = vmatprep.subr.mxu0 0.0
      %900 = vmatpush1.msra.mxu0 %v801
      %901 = vmatprep.subr.mxu0 0.0
      %902 = vmatpush1.msra.mxu0 %v802
      %903 = vmatprep.subr.mxu0 0.0
      %904 = vmatpush1.msra.mxu0 %v803
      %905 = vmatprep.subr.mxu0 0.0
      %906 = vmatpush1.msra.mxu0 %v804
      %907 = vmatprep.subr.mxu0 0.0
      %908 = vmatpush1.msra.mxu0 %v805
      %909 = vmatprep.subr.mxu0 0.0
      %910 = vmatpush1.msra.mxu0 %v806
      %911 = vmatprep.subr.mxu0 0.0
      %912 = vmatpush1.msra.mxu0 %v807
      %913 = vmatprep.subr.mxu0 0.0
      %914 = vmatpush1.msra.mxu0 %v808
      %915 = vmatprep.subr.mxu0 0.0
      %916 = vmatpush1.msra.mxu0 %v809
      %917 = vmatprep.subr.mxu0 0.0
      %918 = vmatpush1.msra.mxu0 %v810
      %919 = vmatprep.subr.mxu0 0.0
      %920 = vmatpush1.msra.mxu0 0.0
      %921 = vmatprep.subr.mxu0 0.0
      %922 = vmatpush1.msra.mxu0 0.0
      %923 = vmatprep.subr.mxu0 0.0
      %924 = vmatpush1.msra.mxu0 0.0
      %925 = vmatprep.subr.mxu0 0.0
      %926 = vmatpush1.msra.mxu0 0.0
      %927 = vmatprep.subr.mxu0 0.0
      %928 = vmatpush1.msra.mxu0 0.0
      %929 = vmatprep.subr.mxu0 0.0
      %930 = vmatpush1.msra.mxu0 0.0
      %931 = vmatprep.subr.mxu0 0.0
      %932 = vmatpush1.msra.mxu0 0.0
      %933 = vmatprep.subr.mxu0 0.0
      %934 = vmatpush1.msra.mxu0 0.0
      %935 = vmatprep.subr.mxu0 0.0
      %936 = vmatpush1.msra.mxu0 0.0
      %937 = vmatprep.subr.mxu0 0.0
      %938 = vmatpush1.msra.mxu0 0.0
      %939 = vmatprep.subr.mxu0 0.0
      %940 = vmatpush1.msra.mxu0 0.0
      %941 = vmatprep.subr.mxu0 0.0
      %942 = vmatpush1.msra.mxu0 0.0
      %943 = vmatprep.subr.mxu0 0.0
      %944 = vmatpush1.msra.mxu0 0.0
      %945 = vmatprep.subr.mxu0 0.0
      %946 = vmatpush1.msra.mxu0 0.0
      %947 = vmatprep.subr.mxu0 0.0
      %948 = vmatpush1.msra.mxu0 0.0
      %949 = vmatprep.subr.mxu0 0.0
      %950 = vmatpush1.msra.mxu0 0.0
      %951 = vmatprep.mubr.f32.mxu0 0.0
      %952 = vmatmul.mubr.f32.gmra.mrb[0].mxu0 %v794
      %v953 = vpop.f32.mrb[0].mxu0
      %v954 = vadd.f32 %v884, %v953
      %v955 = vpop.f32.mrb[0].mxu0
      %956 = vdwg.mxu0
      %v957 = vld [vmem:[%s738] sm:$0x1]
      %v959 = vlaneseq
      %v960 = vshrl.u32 %v959, 7
      %v961 = vsub.s32 0, %v960
      %v962 = vrot.slane %v957, %v961
      %v964 = vadd.f32 %v954, %v962
      %v965 = vmax.f32 %v964, 0.0
      %v966 = vld [vmem:[%s743] sm:$0xff]
      %v967 = vld [vmem:[%s743 + $0x8] sm:$0xff]
      %v968 = vld [vmem:[%s743 + $0x10] sm:$0xff]
      %v969 = vld [vmem:[%s743 + $0x18] sm:$0xff]
      %v970 = vld [vmem:[%s747] sm:$0x1]
      %v972 = vlaneseq
      %v973 = vshrl.u32 %v972, 7
      %v974 = vsub.s32 0, %v973
      %v975 = vrot.slane %v970, %v974
      %vm977 = vcmask 261120
      %v979 = vsel %vm977, %v965, 0
      %981 = vmatprep.subr.mxu0 0.0
      %982 = vmatpush1.msra.mxu0 %v966
      %983 = vmatprep.subr.mxu0 0.0
      %984 = vmatpush1.msra.mxu0 %v967
      %985 = vmatprep.subr.mxu0 0.0
      %986 = vmatpush1.msra.mxu0 %v968
      %987 = vmatprep.subr.mxu0 0.0
      %988 = vmatpush1.msra.mxu0 %v969
      %989 = vmatprep.subr.mxu0 0.0
      %990 = vmatpush1.msra.mxu0 0.0
      %991 = vmatprep.subr.mxu0 0.0
      %992 = vmatpush1.msra.mxu0 0.0
      %993 = vmatprep.subr.mxu0 0.0
      %994 = vmatpush1.msra.mxu0 0.0
      %995 = vmatprep.subr.mxu0 0.0
      %996 = vmatpush1.msra.mxu0 0.0
      %997 = vmatprep.subr.mxu0 0.0
      %998 = vmatpush1.msra.mxu0 0.0
      %999 = vmatprep.subr.mxu0 0.0
      %1000 = vmatpush1.msra.mxu0 0.0
      %1001 = vmatprep.subr.mxu0 0.0
      %1002 = vmatpush1.msra.mxu0 0.0
      %1003 = vmatprep.subr.mxu0 0.0
      %1004 = vmatpush1.msra.mxu0 0.0
      %1005 = vmatprep.subr.mxu0 0.0
      %1006 = vmatpush1.msra.mxu0 0.0
      %1007 = vmatprep.subr.mxu0 0.0
      %1008 = vmatpush1.msra.mxu0 0.0
      %1009 = vmatprep.subr.mxu0 0.0
      %1010 = vmatpush1.msra.mxu0 0.0
      %1011 = vmatprep.subr.mxu0 0.0
      %1012 = vmatpush1.msra.mxu0 0.0
      %1013 = vmatprep.subr.mxu0 0.0
      %1014 = vmatpush1.msra.mxu0 0.0
      %1015 = vmatprep.subr.mxu0 0.0
      %1016 = vmatpush1.msra.mxu0 0.0
      %1017 = vmatprep.subr.mxu0 0.0
      %1018 = vmatpush1.msra.mxu0 0.0
      %1019 = vmatprep.subr.mxu0 0.0
      %1020 = vmatpush1.msra.mxu0 0.0
      %1021 = vmatprep.subr.mxu0 0.0
      %1022 = vmatpush1.msra.mxu0 0.0
      %1023 = vmatprep.subr.mxu0 0.0
      %1024 = vmatpush1.msra.mxu0 0.0
      %1025 = vmatprep.subr.mxu0 0.0
      %1026 = vmatpush1.msra.mxu0 0.0
      %1027 = vmatprep.subr.mxu0 0.0
      %1028 = vmatpush1.msra.mxu0 0.0
      %1029 = vmatprep.subr.mxu0 0.0
      %1030 = vmatpush1.msra.mxu0 0.0
      %1031 = vmatprep.subr.mxu0 0.0
      %1032 = vmatpush1.msra.mxu0 0.0
      %1033 = vmatprep.subr.mxu0 0.0
      %1034 = vmatpush1.msra.mxu0 0.0
      %1035 = vmatprep.subr.mxu0 0.0
      %1036 = vmatpush1.msra.mxu0 0.0
      %1037 = vmatprep.subr.mxu0 0.0
      %1038 = vmatpush1.msra.mxu0 0.0
      %1039 = vmatprep.subr.mxu0 0.0
      %1040 = vmatpush1.msra.mxu0 0.0
      %1041 = vmatprep.subr.mxu0 0.0
      %1042 = vmatpush1.msra.mxu0 0.0
      %1043 = vmatprep.subr.mxu0 0.0
      %1044 = vmatpush1.msra.mxu0 0.0
      %1045 = vmatprep.mubr.f32.mxu0 0.0
      %1046 = vmatmul.mubr.f32.gmra.mrb[0].mxu0 %v979
      %v1047 = vpop.f32.mrb[0].mxu0
      %v1048 = vadd.f32 %v975, %v1047
      %v1049 = vpop.f32.mrb[0].mxu0
      %1050 = vdwg.mxu0
      %v1051 = vmax.f32 %v1048, 0.0
      %s1052 = scalar_lea.vmem %s743, 32
      %v1053 = vld [vmem:[%s1052] sm:$0xff]
      %v1054 = vld [vmem:[%s1052 + $0x8] sm:$0xff]
      %v1055 = vld [vmem:[%s1052 + $0x10] sm:$0xff]
      %v1056 = vld [vmem:[%s1052 + $0x18] sm:$0xff]
      %s1057 = scalar_lea.vmem %s747, 1
      %v1058 = vld [vmem:[%s1057] sm:$0x1]
      %v1060 = vlaneseq
      %v1061 = vshrl.u32 %v1060, 7
      %v1062 = vsub.s32 0, %v1061
      %v1063 = vrot.slane %v1058, %v1062
      %v1066 = vsel %vm977, %v1051, 0
      %1068 = vmatprep.subr.mxu0 0.0
      %1069 = vmatpush1.msra.mxu0 %v1053
      %1070 = vmatprep.subr.mxu0 0.0
      %1071 = vmatpush1.msra.mxu0 %v1054
      %1072 = vmatprep.subr.mxu0 0.0
      %1073 = vmatpush1.msra.mxu0 %v1055
      %1074 = vmatprep.subr.mxu0 0.0
      %1075 = vmatpush1.msra.mxu0 %v1056
      %1076 = vmatprep.subr.mxu0 0.0
      %1077 = vmatpush1.msra.mxu0 0.0
      %1078 = vmatprep.subr.mxu0 0.0
      %1079 = vmatpush1.msra.mxu0 0.0
      %1080 = vmatprep.subr.mxu0 0.0
      %1081 = vmatpush1.msra.mxu0 0.0
      %1082 = vmatprep.subr.mxu0 0.0
      %1083 = vmatpush1.msra.mxu0 0.0
      %1084 = vmatprep.subr.mxu0 0.0
      %1085 = vmatpush1.msra.mxu0 0.0
      %1086 = vmatprep.subr.mxu0 0.0
      %1087 = vmatpush1.msra.mxu0 0.0
      %1088 = vmatprep.subr.mxu0 0.0
      %1089 = vmatpush1.msra.mxu0 0.0
      %1090 = vmatprep.subr.mxu0 0.0
      %1091 = vmatpush1.msra.mxu0 0.0
      %1092 = vmatprep.subr.mxu0 0.0
      %1093 = vmatpush1.msra.mxu0 0.0
      %1094 = vmatprep.subr.mxu0 0.0
      %1095 = vmatpush1.msra.mxu0 0.0
      %1096 = vmatprep.subr.mxu0 0.0
      %1097 = vmatpush1.msra.mxu0 0.0
      %1098 = vmatprep.subr.mxu0 0.0
      %1099 = vmatpush1.msra.mxu0 0.0
      %1100 = vmatprep.subr.mxu0 0.0
      %1101 = vmatpush1.msra.mxu0 0.0
      %1102 = vmatprep.subr.mxu0 0.0
      %1103 = vmatpush1.msra.mxu0 0.0
      %1104 = vmatprep.subr.mxu0 0.0
      %1105 = vmatpush1.msra.mxu0 0.0
      %1106 = vmatprep.subr.mxu0 0.0
      %1107 = vmatpush1.msra.mxu0 0.0
      %1108 = vmatprep.subr.mxu0 0.0
      %1109 = vmatpush1.msra.mxu0 0.0
      %1110 = vmatprep.subr.mxu0 0.0
      %1111 = vmatpush1.msra.mxu0 0.0
      %1112 = vmatprep.subr.mxu0 0.0
      %1113 = vmatpush1.msra.mxu0 0.0
      %1114 = vmatprep.subr.mxu0 0.0
      %1115 = vmatpush1.msra.mxu0 0.0
      %1116 = vmatprep.subr.mxu0 0.0
      %1117 = vmatpush1.msra.mxu0 0.0
      %1118 = vmatprep.subr.mxu0 0.0
      %1119 = vmatpush1.msra.mxu0 0.0
      %1120 = vmatprep.subr.mxu0 0.0
      %1121 = vmatpush1.msra.mxu0 0.0
      %1122 = vmatprep.subr.mxu0 0.0
      %1123 = vmatpush1.msra.mxu0 0.0
      %1124 = vmatprep.subr.mxu0 0.0
      %1125 = vmatpush1.msra.mxu0 0.0
      %1126 = vmatprep.subr.mxu0 0.0
      %1127 = vmatpush1.msra.mxu0 0.0
      %1128 = vmatprep.subr.mxu0 0.0
      %1129 = vmatpush1.msra.mxu0 0.0
      %1130 = vmatprep.subr.mxu0 0.0
      %1131 = vmatpush1.msra.mxu0 0.0
      %1132 = vmatprep.mubr.f32.mxu0 0.0
      %1133 = vmatmul.mubr.f32.gmra.mrb[0].mxu0 %v1066
      %v1134 = vpop.f32.mrb[0].mxu0
      %v1135 = vadd.f32 %v1063, %v1134
      %v1136 = vpop.f32.mrb[0].mxu0
      %1137 = vdwg.mxu0
      %v1138 = vmax.f32 %v1135, 0.0
      %v1139 = vld [vmem:[%s752] sm:$0xff]
      %v1140 = vld [vmem:[%s752 + $0x8] sm:$0xff]
      %v1141 = vld [vmem:[%s752 + $0x10] sm:$0xff]
      %v1142 = vld [vmem:[%s752 + $0x18] sm:$0xff]
      %v1143 = vld [vmem:[%s755] sm:$0x1]
      %v1145 = vlaneseq
      %v1146 = vshrl.u32 %v1145, 7
      %v1147 = vsub.s32 0, %v1146
      %v1148 = vrot.slane %v1143, %v1147
      %v1151 = vsel %vm977, %v1138, 0
      %1153 = vmatprep.subr.mxu0 0.0
      %1154 = vmatpush1.msra.mxu0 %v1139
      %1155 = vmatprep.subr.mxu0 0.0
      %1156 = vmatpush1.msra.mxu0 %v1140
      %1157 = vmatprep.subr.mxu0 0.0
      %1158 = vmatpush1.msra.mxu0 %v1141
      %1159 = vmatprep.subr.mxu0 0.0
      %1160 = vmatpush1.msra.mxu0 %v1142
      %1161 = vmatprep.subr.mxu0 0.0
      %1162 = vmatpush1.msra.mxu0 0.0
      %1163 = vmatprep.subr.mxu0 0.0
      %1164 = vmatpush1.msra.mxu0 0.0
      %1165 = vmatprep.subr.mxu0 0.0
      %1166 = vmatpush1.msra.mxu0 0.0
      %1167 = vmatprep.subr.mxu0 0.0
      %1168 = vmatpush1.msra.mxu0 0.0
      %1169 = vmatprep.subr.mxu0 0.0
      %1170 = vmatpush1.msra.mxu0 0.0
      %1171 = vmatprep.subr.mxu0 0.0
      %1172 = vmatpush1.msra.mxu0 0.0
      %1173 = vmatprep.subr.mxu0 0.0
      %1174 = vmatpush1.msra.mxu0 0.0
      %1175 = vmatprep.subr.mxu0 0.0
      %1176 = vmatpush1.msra.mxu0 0.0
      %1177 = vmatprep.subr.mxu0 0.0
      %1178 = vmatpush1.msra.mxu0 0.0
      %1179 = vmatprep.subr.mxu0 0.0
      %1180 = vmatpush1.msra.mxu0 0.0
      %1181 = vmatprep.subr.mxu0 0.0
      %1182 = vmatpush1.msra.mxu0 0.0
      %1183 = vmatprep.subr.mxu0 0.0
      %1184 = vmatpush1.msra.mxu0 0.0
      %1185 = vmatprep.subr.mxu0 0.0
      %1186 = vmatpush1.msra.mxu0 0.0
      %1187 = vmatprep.subr.mxu0 0.0
      %1188 = vmatpush1.msra.mxu0 0.0
      %1189 = vmatprep.subr.mxu0 0.0
      %1190 = vmatpush1.msra.mxu0 0.0
      %1191 = vmatprep.subr.mxu0 0.0
      %1192 = vmatpush1.msra.mxu0 0.0
      %1193 = vmatprep.subr.mxu0 0.0
      %1194 = vmatpush1.msra.mxu0 0.0
      %1195 = vmatprep.subr.mxu0 0.0
      %1196 = vmatpush1.msra.mxu0 0.0
      %1197 = vmatprep.subr.mxu0 0.0
      %1198 = vmatpush1.msra.mxu0 0.0
      %1199 = vmatprep.subr.mxu0 0.0
      %1200 = vmatpush1.msra.mxu0 0.0
      %1201 = vmatprep.subr.mxu0 0.0
      %1202 = vmatpush1.msra.mxu0 0.0
      %1203 = vmatprep.subr.mxu0 0.0
      %1204 = vmatpush1.msra.mxu0 0.0
      %1205 = vmatprep.subr.mxu0 0.0
      %1206 = vmatpush1.msra.mxu0 0.0
      %1207 = vmatprep.subr.mxu0 0.0
      %1208 = vmatpush1.msra.mxu0 0.0
      %1209 = vmatprep.subr.mxu0 0.0
      %1210 = vmatpush1.msra.mxu0 0.0
      %1211 = vmatprep.subr.mxu0 0.0
      %1212 = vmatpush1.msra.mxu0 0.0
      %1213 = vmatprep.subr.mxu0 0.0
      %1214 = vmatpush1.msra.mxu0 0.0
      %1215 = vmatprep.subr.mxu0 0.0
      %1216 = vmatpush1.msra.mxu0 0.0
      %1217 = vmatprep.mubr.f32.mxu0 0.0
      %1218 = vmatmul.mubr.f32.gmra.mrb[0].mxu0 %v1151
      %v1219 = vpop.f32.mrb[0].mxu0
      %v1220 = vadd.f32 %v1148, %v1219
      %v1221 = vpop.f32.mrb[0].mxu0
      %1222 = vdwg.mxu0
      %v1223 = vmax.f32 %v1220, 0.0
      %v1224 = vmul.f32 %v1223, %v1223
      %vm1225 = vcmask 269312
      %v1226 = vsel %vm1225, %v1224, 0.0
      %1227 = vadd.xlane.f32.xlu0 %v1226
      %v1228 = vpop.xlane.xlu0 %1227
      %v1229 = vmax.f32 %v1228, 1e-24
      %v1230 = vrsqrt.pop %v1229
      %v1231 = vmul.f32 %v1223, %v1230
      %v1232 = vld [vmem:[%s760] sm:$0xff]
      %v1233 = vld [vmem:[%s760 + $0x8] sm:$0xff]
      %v1234 = vld [vmem:[%s760 + $0x10] sm:$0xff]
      %v1235 = vld [vmem:[%s760 + $0x18] sm:$0xff]
      %v1236 = vld [vmem:[%s760 + $0x20] sm:$0x1]
      %v1238 = vsel %vm1225, %v1231, 0
      %vm1240 = vcmask 1040384
      %v1242 = vsel %vm1240, %v1236, 0
      %1244 = vmatprep.subr.mxu0 0.0
      %1245 = vmatpush1.msra.mxu0 %v1232
      %1246 = vmatprep.subr.mxu0 0.0
      %1247 = vmatpush1.msra.mxu0 %v1233
      %1248 = vmatprep.subr.mxu0 0.0
      %1249 = vmatpush1.msra.mxu0 %v1234
      %1250 = vmatprep.subr.mxu0 0.0
      %1251 = vmatpush1.msra.mxu0 %v1235
      %1252 = vmatprep.subr.mxu0 0.0
      %1253 = vmatpush1.msra.mxu0 %v1242
      %1254 = vmatprep.subr.mxu0 0.0
      %1255 = vmatpush1.msra.mxu0 0.0
      %1256 = vmatprep.subr.mxu0 0.0
      %1257 = vmatpush1.msra.mxu0 0.0
      %1258 = vmatprep.subr.mxu0 0.0
      %1259 = vmatpush1.msra.mxu0 0.0
      %1260 = vmatprep.subr.mxu0 0.0
      %1261 = vmatpush1.msra.mxu0 0.0
      %1262 = vmatprep.subr.mxu0 0.0
      %1263 = vmatpush1.msra.mxu0 0.0
      %1264 = vmatprep.subr.mxu0 0.0
      %1265 = vmatpush1.msra.mxu0 0.0
      %1266 = vmatprep.subr.mxu0 0.0
      %1267 = vmatpush1.msra.mxu0 0.0
      %1268 = vmatprep.subr.mxu0 0.0
      %1269 = vmatpush1.msra.mxu0 0.0
      %1270 = vmatprep.subr.mxu0 0.0
      %1271 = vmatpush1.msra.mxu0 0.0
      %1272 = vmatprep.subr.mxu0 0.0
      %1273 = vmatpush1.msra.mxu0 0.0
      %1274 = vmatprep.subr.mxu0 0.0
      %1275 = vmatpush1.msra.mxu0 0.0
      %1276 = vmatprep.subr.mxu0 0.0
      %1277 = vmatpush1.msra.mxu0 0.0
      %1278 = vmatprep.subr.mxu0 0.0
      %1279 = vmatpush1.msra.mxu0 0.0
      %1280 = vmatprep.subr.mxu0 0.0
      %1281 = vmatpush1.msra.mxu0 0.0
      %1282 = vmatprep.subr.mxu0 0.0
      %1283 = vmatpush1.msra.mxu0 0.0
      %1284 = vmatprep.subr.mxu0 0.0
      %1285 = vmatpush1.msra.mxu0 0.0
      %1286 = vmatprep.subr.mxu0 0.0
      %1287 = vmatpush1.msra.mxu0 0.0
      %1288 = vmatprep.subr.mxu0 0.0
      %1289 = vmatpush1.msra.mxu0 0.0
      %1290 = vmatprep.subr.mxu0 0.0
      %1291 = vmatpush1.msra.mxu0 0.0
      %1292 = vmatprep.subr.mxu0 0.0
      %1293 = vmatpush1.msra.mxu0 0.0
      %1294 = vmatprep.subr.mxu0 0.0
      %1295 = vmatpush1.msra.mxu0 0.0
      %1296 = vmatprep.subr.mxu0 0.0
      %1297 = vmatpush1.msra.mxu0 0.0
      %1298 = vmatprep.subr.mxu0 0.0
      %1299 = vmatpush1.msra.mxu0 0.0
      %1300 = vmatprep.subr.mxu0 0.0
      %1301 = vmatpush1.msra.mxu0 0.0
      %1302 = vmatprep.subr.mxu0 0.0
      %1303 = vmatpush1.msra.mxu0 0.0
      %1304 = vmatprep.subr.mxu0 0.0
      %1305 = vmatpush1.msra.mxu0 0.0
      %1306 = vmatprep.subr.mxu0 0.0
      %1307 = vmatpush1.msra.mxu0 0.0
      %1308 = vmatprep.mubr.f32.mxu0 0.0
      %1309 = vmatmul.mubr.f32.gmra.mrb[0].mxu0 %v1238
      %v1310 = vpop.f32.mrb[0].mxu0
      %v1311 = vadd.f32 0.0, %v1310
      %v1312 = vpop.f32.mrb[0].mxu0
      %1313 = vdwg.mxu0
      %v1314 = vsub.f32 1.0, %v1311
      %v1315 = vmul.f32 %v1314, 0.5
      %v1316 = vsub.f32 1.0, %v1315
      %v1317 = vmax.f32 %v1315, 0.01
      %v1318 = vmin.f32 %v1317, 0.99
      %v1319 = vlog2.pop %v1318
      %v1320 = vmul.f32 %v1319, 0.6931472
      %v1321 = vmax.f32 %v1316, 0.01
      %v1322 = vmin.f32 %v1321, 0.99
      %v1323 = vlog2.pop %v1322
      %v1324 = vmul.f32 %v1323, 0.6931472
      %v1325 = vld [vmem:[%s14] sm:$0x7f]
      %v1326 = vld [vmem:[%s15] sm:$0x7f]
      %vm1327 = vcmask 56320
      %v1329 = vsel %vm1327, %v1324, 0
      %vm1331 = vcmask 1046528
      %v1333 = vsel %vm1331, %v1326, 0
      %1335 = vmatprep.subr.mxu0 0.0
      %1336 = vmatpush1.msra.mxu0 %v1333
      %1337 = vmatprep.subr.mxu0 0.0
      %1338 = vmatpush1.msra.mxu0 0.0
      %1339 = vmatprep.subr.mxu0 0.0
      %1340 = vmatpush1.msra.mxu0 0.0
      %1341 = vmatprep.subr.mxu0 0.0
      %1342 = vmatpush1.msra.mxu0 0.0
      %1343 = vmatprep.subr.mxu0 0.0
      %1344 = vmatpush1.msra.mxu0 0.0
      %1345 = vmatprep.subr.mxu0 0.0
      %1346 = vmatpush1.msra.mxu0 0.0
      %1347 = vmatprep.subr.mxu0 0.0
      %1348 = vmatpush1.msra.mxu0 0.0
      %1349 = vmatprep.subr.mxu0 0.0
      %1350 = vmatpush1.msra.mxu0 0.0
      %1351 = vmatprep.subr.mxu0 0.0
      %1352 = vmatpush1.msra.mxu0 0.0
      %1353 = vmatprep.subr.mxu0 0.0
      %1354 = vmatpush1.msra.mxu0 0.0
      %1355 = vmatprep.subr.mxu0 0.0
      %1356 = vmatpush1.msra.mxu0 0.0
      %1357 = vmatprep.subr.mxu0 0.0
      %1358 = vmatpush1.msra.mxu0 0.0
      %1359 = vmatprep.subr.mxu0 0.0
      %1360 = vmatpush1.msra.mxu0 0.0
      %1361 = vmatprep.subr.mxu0 0.0
      %1362 = vmatpush1.msra.mxu0 0.0
      %1363 = vmatprep.subr.mxu0 0.0
      %1364 = vmatpush1.msra.mxu0 0.0
      %1365 = vmatprep.subr.mxu0 0.0
      %1366 = vmatpush1.msra.mxu0 0.0
      %1367 = vmatprep.subr.mxu0 0.0
      %1368 = vmatpush1.msra.mxu0 0.0
      %1369 = vmatprep.subr.mxu0 0.0
      %1370 = vmatpush1.msra.mxu0 0.0
      %1371 = vmatprep.subr.mxu0 0.0
      %1372 = vmatpush1.msra.mxu0 0.0
      %1373 = vmatprep.subr.mxu0 0.0
      %1374 = vmatpush1.msra.mxu0 0.0
      %1375 = vmatprep.subr.mxu0 0.0
      %1376 = vmatpush1.msra.mxu0 0.0
      %1377 = vmatprep.subr.mxu0 0.0
      %1378 = vmatpush1.msra.mxu0 0.0
      %1379 = vmatprep.subr.mxu0 0.0
      %1380 = vmatpush1.msra.mxu0 0.0
      %1381 = vmatprep.subr.mxu0 0.0
      %1382 = vmatpush1.msra.mxu0 0.0
      %1383 = vmatprep.subr.mxu0 0.0
      %1384 = vmatpush1.msra.mxu0 0.0
      %1385 = vmatprep.subr.mxu0 0.0
      %1386 = vmatpush1.msra.mxu0 0.0
      %1387 = vmatprep.subr.mxu0 0.0
      %1388 = vmatpush1.msra.mxu0 0.0
      %1389 = vmatprep.subr.mxu0 0.0
      %1390 = vmatpush1.msra.mxu0 0.0
      %1391 = vmatprep.subr.mxu0 0.0
      %1392 = vmatpush1.msra.mxu0 0.0
      %1393 = vmatprep.subr.mxu0 0.0
      %1394 = vmatpush1.msra.mxu0 0.0
      %1395 = vmatprep.subr.mxu0 0.0
      %1396 = vmatpush1.msra.mxu0 0.0
      %1397 = vmatprep.subr.mxu0 0.0
      %1398 = vmatpush1.msra.mxu0 0.0
      %1399 = vmatprep.mubr.f32.mxu0 0.0
      %1400 = vmatmul.mubr.f32.gmra.mrb[0].mxu0 %v1329
      %v1401 = vpop.f32.mrb[0].mxu0
      %v1402 = vadd.f32 0.0, %v1401
      %v1403 = vpop.f32.mrb[0].mxu0
      %1404 = vdwg.mxu0
      %v1406 = vsel %vm1327, %v1320, 0
      %v1409 = vsel %vm1331, %v1325, 0
      %1411 = vmatprep.subr.mxu0 0.0
      %1412 = vmatpush1.msra.mxu0 %v1409
      %1413 = vmatprep.subr.mxu0 0.0
      %1414 = vmatpush1.msra.mxu0 0.0
      %1415 = vmatprep.subr.mxu0 0.0
      %1416 = vmatpush1.msra.mxu0 0.0
      %1417 = vmatprep.subr.mxu0 0.0
      %1418 = vmatpush1.msra.mxu0 0.0
      %1419 = vmatprep.subr.mxu0 0.0
      %1420 = vmatpush1.msra.mxu0 0.0
      %1421 = vmatprep.subr.mxu0 0.0
      %1422 = vmatpush1.msra.mxu0 0.0
      %1423 = vmatprep.subr.mxu0 0.0
      %1424 = vmatpush1.msra.mxu0 0.0
      %1425 = vmatprep.subr.mxu0 0.0
      %1426 = vmatpush1.msra.mxu0 0.0
      %1427 = vmatprep.subr.mxu0 0.0
      %1428 = vmatpush1.msra.mxu0 0.0
      %1429 = vmatprep.subr.mxu0 0.0
      %1430 = vmatpush1.msra.mxu0 0.0
      %1431 = vmatprep.subr.mxu0 0.0
      %1432 = vmatpush1.msra.mxu0 0.0
      %1433 = vmatprep.subr.mxu0 0.0
      %1434 = vmatpush1.msra.mxu0 0.0
      %1435 = vmatprep.subr.mxu0 0.0
      %1436 = vmatpush1.msra.mxu0 0.0
      %1437 = vmatprep.subr.mxu0 0.0
      %1438 = vmatpush1.msra.mxu0 0.0
      %1439 = vmatprep.subr.mxu0 0.0
      %1440 = vmatpush1.msra.mxu0 0.0
      %1441 = vmatprep.subr.mxu0 0.0
      %1442 = vmatpush1.msra.mxu0 0.0
      %1443 = vmatprep.subr.mxu0 0.0
      %1444 = vmatpush1.msra.mxu0 0.0
      %1445 = vmatprep.subr.mxu0 0.0
      %1446 = vmatpush1.msra.mxu0 0.0
      %1447 = vmatprep.subr.mxu0 0.0
      %1448 = vmatpush1.msra.mxu0 0.0
      %1449 = vmatprep.subr.mxu0 0.0
      %1450 = vmatpush1.msra.mxu0 0.0
      %1451 = vmatprep.subr.mxu0 0.0
      %1452 = vmatpush1.msra.mxu0 0.0
      %1453 = vmatprep.subr.mxu0 0.0
      %1454 = vmatpush1.msra.mxu0 0.0
      %1455 = vmatprep.subr.mxu0 0.0
      %1456 = vmatpush1.msra.mxu0 0.0
      %1457 = vmatprep.subr.mxu0 0.0
      %1458 = vmatpush1.msra.mxu0 0.0
      %1459 = vmatprep.subr.mxu0 0.0
      %1460 = vmatpush1.msra.mxu0 0.0
      %1461 = vmatprep.subr.mxu0 0.0
      %1462 = vmatpush1.msra.mxu0 0.0
      %1463 = vmatprep.subr.mxu0 0.0
      %1464 = vmatpush1.msra.mxu0 0.0
      %1465 = vmatprep.subr.mxu0 0.0
      %1466 = vmatpush1.msra.mxu0 0.0
      %1467 = vmatprep.subr.mxu0 0.0
      %1468 = vmatpush1.msra.mxu0 0.0
      %1469 = vmatprep.subr.mxu0 0.0
      %1470 = vmatpush1.msra.mxu0 0.0
      %1471 = vmatprep.subr.mxu0 0.0
      %1472 = vmatpush1.msra.mxu0 0.0
      %1473 = vmatprep.subr.mxu0 0.0
      %1474 = vmatpush1.msra.mxu0 0.0
      %1475 = vmatprep.mubr.f32.mxu0 0.0
      %1476 = vmatmul.mubr.f32.gmra.mrb[0].mxu0 %v1406
      %v1477 = vpop.f32.mrb[0].mxu0
      %v1478 = vadd.f32 %v1402, %v1477
      %v1479 = vpop.f32.mrb[0].mxu0
      %1480 = vdwg.mxu0
      %v1481 = vmul.f32 %v1478, 1.442695
      %v1482 = vpow.pop %v1481
      %v1483 = vmul.f32 %v1482, %v1478
      %v1484 = vsel %vm813, %v1483, 0.0
      %1485 = vadd.xlane.f32.xlu0 %v1484
      %v1486 = vpop.xlane.xlu0 %1485
      %v1487 = vsub.f32 0.0, %v1486
      %v1488 = vlaneseq
      %v1489 = vshrl.u32 %v1488, 7
      %vm1490 = vcmp.lt.s32.totalorder %v1489, 2
      %v1491 = vsel %vm1490, %v1487, 0.0
      %vm1492 = vcmask 7168
      %v1493 = vsel %vm1492, %v1491, 0.0
      %1494 = vadd.xlane.f32.xlu0 %v1493
      %v1495 = vpop.xlane.xlu0 %1494
      %v1496 = vrot.slane %v1495, 4
      %v1497 = vadd.f32 %v1495, %v1496
      %v1498 = vrot.slane %v1497, 2
      %v1499 = vadd.f32 %v1497, %v1498
      %v1500 = vrot.slane %v1499, 1
      %v1501 = vadd.f32 %v1499, %v1500
      %s1502 = vtos %v1501
      %s1503 = smul.f32 %s1502, 0.18033688
      %s1504 = sadd.f32 %s1503, 1.0
      %v1505 = vld [vmem:[%s765] sm:$0xff]
      %v1506 = vld [vmem:[%s765 + $0x8] sm:$0xff]
      %v1507 = vld [vmem:[%s765 + $0x10] sm:$0xff]
      %v1508 = vld [vmem:[%s765 + $0x18] sm:$0xff]
      %v1509 = vld [vmem:[%s765 + $0x20] sm:$0xff]
      %v1510 = vld [vmem:[%s765 + $0x28] sm:$0xff]
      %v1511 = vld [vmem:[%s765 + $0x30] sm:$0xff]
      %v1512 = vld [vmem:[%s765 + $0x38] sm:$0xff]
      %v1513 = vld [vmem:[%s765 + $0x40] sm:$0x1]
      %v1514 = vld [vmem:[%s765 + $0x48] sm:$0x1]
      %v1515 = vld [vmem:[%s769] sm:$0x3]
      %v1517 = vlaneseq
      %v1518 = vshrl.u32 %v1517, 7
      %v1519 = vsub.s32 0, %v1518
      %v1520 = vrot.slane %v1515, %v1519
      %v1521 = vlaneseq
      %v1522 = vshrl.u32 %v1521, 7
      %v1523 = vsub.s32 1, %v1522
      %v1524 = vrot.slane %v1515, %v1523
      %v1528 = vsel %vm1225, %v1223, 0
      %v1531 = vsel %vm1240, %v1513, 0
      %v1534 = vsel %vm1240, %v1514, 0
      %1536 = vmatprep.subr.mxu0 %v1506
      %1537 = vmatpush1.msra.mxu0 %v1505
      %1538 = vmatprep.subr.mxu0 %v1508
      %1539 = vmatpush1.msra.mxu0 %v1507
      %1540 = vmatprep.subr.mxu0 %v1510
      %1541 = vmatpush1.msra.mxu0 %v1509
      %1542 = vmatprep.subr.mxu0 %v1512
      %1543 = vmatpush1.msra.mxu0 %v1511
      %1544 = vmatprep.subr.mxu0 %v1534
      %1545 = vmatpush1.msra.mxu0 %v1531
      %1546 = vmatprep.subr.mxu0 0.0
      %1547 = vmatpush1.msra.mxu0 0.0
      %1548 = vmatprep.subr.mxu0 0.0
      %1549 = vmatpush1.msra.mxu0 0.0
      %1550 = vmatprep.subr.mxu0 0.0
      %1551 = vmatpush1.msra.mxu0 0.0
      %1552 = vmatprep.subr.mxu0 0.0
      %1553 = vmatpush1.msra.mxu0 0.0
      %1554 = vmatprep.subr.mxu0 0.0
      %1555 = vmatpush1.msra.mxu0 0.0
      %1556 = vmatprep.subr.mxu0 0.0
      %1557 = vmatpush1.msra.mxu0 0.0
      %1558 = vmatprep.subr.mxu0 0.0
      %1559 = vmatpush1.msra.mxu0 0.0
      %1560 = vmatprep.subr.mxu0 0.0
      %1561 = vmatpush1.msra.mxu0 0.0
      %1562 = vmatprep.subr.mxu0 0.0
      %1563 = vmatpush1.msra.mxu0 0.0
      %1564 = vmatprep.subr.mxu0 0.0
      %1565 = vmatpush1.msra.mxu0 0.0
      %1566 = vmatprep.subr.mxu0 0.0
      %1567 = vmatpush1.msra.mxu0 0.0
      %1568 = vmatprep.subr.mxu0 0.0
      %1569 = vmatpush1.msra.mxu0 0.0
      %1570 = vmatprep.subr.mxu0 0.0
      %1571 = vmatpush1.msra.mxu0 0.0
      %1572 = vmatprep.subr.mxu0 0.0
      %1573 = vmatpush1.msra.mxu0 0.0
      %1574 = vmatprep.subr.mxu0 0.0
      %1575 = vmatpush1.msra.mxu0 0.0
      %1576 = vmatprep.subr.mxu0 0.0
      %1577 = vmatpush1.msra.mxu0 0.0
      %1578 = vmatprep.subr.mxu0 0.0
      %1579 = vmatpush1.msra.mxu0 0.0
      %1580 = vmatprep.subr.mxu0 0.0
      %1581 = vmatpush1.msra.mxu0 0.0
      %1582 = vmatprep.subr.mxu0 0.0
      %1583 = vmatpush1.msra.mxu0 0.0
      %1584 = vmatprep.subr.mxu0 0.0
      %1585 = vmatpush1.msra.mxu0 0.0
      %1586 = vmatprep.subr.mxu0 0.0
      %1587 = vmatpush1.msra.mxu0 0.0
      %1588 = vmatprep.subr.mxu0 0.0
      %1589 = vmatpush1.msra.mxu0 0.0
      %1590 = vmatprep.subr.mxu0 0.0
      %1591 = vmatpush1.msra.mxu0 0.0
      %1592 = vmatprep.subr.mxu0 0.0
      %1593 = vmatpush1.msra.mxu0 0.0
      %1594 = vmatprep.subr.mxu0 0.0
      %1595 = vmatpush1.msra.mxu0 0.0
      %1596 = vmatprep.subr.mxu0 0.0
      %1597 = vmatpush1.msra.mxu0 0.0
      %1598 = vmatprep.subr.mxu0 0.0
      %1599 = vmatpush1.msra.mxu0 0.0
      %1600 = vmatprep.mubr.f32.mxu0 0.0
      %1601 = vmatmul.mubr.f32.gmra.mrb[0].mxu0 %v1528
      %v1602 = vpop.f32.mrb[0].mxu0
      %v1603 = vadd.f32 %v1520, %v1602
      %v1604 = vpop.f32.mrb[0].mxu0
      %v1605 = vadd.f32 %v1524, %v1604
      %1606 = vdwg.mxu0
      %v1607 = vld [vmem:[%s16] sm:$0xff]
      %v1608 = vld [vmem:[%s16 + $0x8] sm:$0xff]
      %v1610 = vsel %vm813, %v1482, 0
      %1612 = vmatprep.subr.mxu0 %v1608
      %1613 = vmatpush1.msra.mxu0 %v1607
      %1614 = vmatprep.subr.mxu0 0.0
      %1615 = vmatpush1.msra.mxu0 0.0
      %1616 = vmatprep.subr.mxu0 0.0
      %1617 = vmatpush1.msra.mxu0 0.0
      %1618 = vmatprep.subr.mxu0 0.0
      %1619 = vmatpush1.msra.mxu0 0.0
      %1620 = vmatprep.subr.mxu0 0.0
      %1621 = vmatpush1.msra.mxu0 0.0
      %1622 = vmatprep.subr.mxu0 0.0
      %1623 = vmatpush1.msra.mxu0 0.0
      %1624 = vmatprep.subr.mxu0 0.0
      %1625 = vmatpush1.msra.mxu0 0.0
      %1626 = vmatprep.subr.mxu0 0.0
      %1627 = vmatpush1.msra.mxu0 0.0
      %1628 = vmatprep.subr.mxu0 0.0
      %1629 = vmatpush1.msra.mxu0 0.0
      %1630 = vmatprep.subr.mxu0 0.0
      %1631 = vmatpush1.msra.mxu0 0.0
      %1632 = vmatprep.subr.mxu0 0.0
      %1633 = vmatpush1.msra.mxu0 0.0
      %1634 = vmatprep.subr.mxu0 0.0
      %1635 = vmatpush1.msra.mxu0 0.0
      %1636 = vmatprep.subr.mxu0 0.0
      %1637 = vmatpush1.msra.mxu0 0.0
      %1638 = vmatprep.subr.mxu0 0.0
      %1639 = vmatpush1.msra.mxu0 0.0
      %1640 = vmatprep.subr.mxu0 0.0
      %1641 = vmatpush1.msra.mxu0 0.0
      %1642 = vmatprep.subr.mxu0 0.0
      %1643 = vmatpush1.msra.mxu0 0.0
      %1644 = vmatprep.subr.mxu0 0.0
      %1645 = vmatpush1.msra.mxu0 0.0
      %1646 = vmatprep.subr.mxu0 0.0
      %1647 = vmatpush1.msra.mxu0 0.0
      %1648 = vmatprep.subr.mxu0 0.0
      %1649 = vmatpush1.msra.mxu0 0.0
      %1650 = vmatprep.subr.mxu0 0.0
      %1651 = vmatpush1.msra.mxu0 0.0
      %1652 = vmatprep.subr.mxu0 0.0
      %1653 = vmatpush1.msra.mxu0 0.0
      %1654 = vmatprep.subr.mxu0 0.0
      %1655 = vmatpush1.msra.mxu0 0.0
      %1656 = vmatprep.subr.mxu0 0.0
      %1657 = vmatpush1.msra.mxu0 0.0
      %1658 = vmatprep.subr.mxu0 0.0
      %1659 = vmatpush1.msra.mxu0 0.0
      %1660 = vmatprep.subr.mxu0 0.0
      %1661 = vmatpush1.msra.mxu0 0.0
      %1662 = vmatprep.subr.mxu0 0.0
      %1663 = vmatpush1.msra.mxu0 0.0
      %1664 = vmatprep.subr.mxu0 0.0
      %1665 = vmatpush1.msra.mxu0 0.0
      %1666 = vmatprep.subr.mxu0 0.0
      %1667 = vmatpush1.msra.mxu0 0.0
      %1668 = vmatprep.subr.mxu0 0.0
      %1669 = vmatpush1.msra.mxu0 0.0
      %1670 = vmatprep.subr.mxu0 0.0
      %1671 = vmatpush1.msra.mxu0 0.0
      %1672 = vmatprep.subr.mxu0 0.0
      %1673 = vmatpush1.msra.mxu0 0.0
      %1674 = vmatprep.subr.mxu0 0.0
      %1675 = vmatpush1.msra.mxu0 0.0
      %1676 = vmatprep.mubr.f32.mxu0 0.0
      %1677 = vmatmul.mubr.f32.gmra.mrb[0].mxu0 %v1610
      %v1678 = vpop.f32.mrb[0].mxu0
      %v1679 = vadd.f32 0.0, %v1678
      %v1680 = vpop.f32.mrb[0].mxu0
      %v1681 = vadd.f32 0.0, %v1680
      %1682 = vdwg.mxu0
      %v1683 = vmul.f32 %v1679, %v1603
      %v1684 = vmul.f32 %v1681, %v1605
      %v1685 = vld [vmem:[%s17] sm:$0xff]
      %v1686 = vld [vmem:[%s17 + $0x8] sm:$0xff]
      %v1687 = vld [vmem:[%s17 + $0x10] sm:$0xff]
      %v1688 = vld [vmem:[%s17 + $0x18] sm:$0xff]
      %v1689 = vld [vmem:[%s17 + $0x20] sm:$0xff]
      %v1690 = vld [vmem:[%s17 + $0x28] sm:$0xff]
      %v1691 = vld [vmem:[%s17 + $0x30] sm:$0xff]
      %v1692 = vld [vmem:[%s17 + $0x38] sm:$0xff]
      %v1693 = vld [vmem:[%s17 + $0x40] sm:$0xff]
      %v1694 = vld [vmem:[%s17 + $0x48] sm:$0xff]
      %v1695 = vld [vmem:[%s17 + $0x50] sm:$0xff]
      %v1696 = vld [vmem:[%s17 + $0x58] sm:$0xff]
      %v1697 = vld [vmem:[%s17 + $0x60] sm:$0xff]
      %v1698 = vld [vmem:[%s17 + $0x68] sm:$0xff]
      %v1699 = vld [vmem:[%s17 + $0x70] sm:$0xff]
      %v1700 = vld [vmem:[%s17 + $0x78] sm:$0xff]
      %v1701 = vld [vmem:[%s17 + $0x80] sm:$0xff]
      %v1702 = vld [vmem:[%s17 + $0x88] sm:$0xff]
      %v1703 = vld [vmem:[%s17 + $0x90] sm:$0xff]
      %v1704 = vld [vmem:[%s17 + $0x98] sm:$0xff]
      %v1705 = vld [vmem:[%s17 + $0xa0] sm:$0xff]
      %v1706 = vld [vmem:[%s17 + $0xa8] sm:$0xff]
      %v1707 = vld [vmem:[%s17 + $0xb0] sm:$0xff]
      %v1708 = vld [vmem:[%s17 + $0xb8] sm:$0xff]
      %v1709 = vld [vmem:[%s17 + $0xc0] sm:$0xff]
      %v1710 = vld [vmem:[%s17 + $0xc8] sm:$0xff]
      %v1711 = vld [vmem:[%s17 + $0xd0] sm:$0xff]
      %v1712 = vld [vmem:[%s17 + $0xd8] sm:$0xff]
      %v1713 = vld [vmem:[%s17 + $0xe0] sm:$0xff]
      %v1714 = vld [vmem:[%s17 + $0xe8] sm:$0xff]
      %v1715 = vld [vmem:[%s17 + $0xf0] sm:$0xff]
      %v1716 = vld [vmem:[%s17 + $0xf8] sm:$0xff]
      %1717 = vmatprep.subr.mxu0 0.0
      %1718 = vmatpush1.msra.mxu0 %v1685
      %1719 = vmatprep.subr.mxu0 0.0
      %1720 = vmatpush1.msra.mxu0 %v1686
      %1721 = vmatprep.subr.mxu0 0.0
      %1722 = vmatpush1.msra.mxu0 %v1687
      %1723 = vmatprep.subr.mxu0 0.0
      %1724 = vmatpush1.msra.mxu0 %v1688
      %1725 = vmatprep.subr.mxu0 0.0
      %1726 = vmatpush1.msra.mxu0 %v1689
      %1727 = vmatprep.subr.mxu0 0.0
      %1728 = vmatpush1.msra.mxu0 %v1690
      %1729 = vmatprep.subr.mxu0 0.0
      %1730 = vmatpush1.msra.mxu0 %v1691
      %1731 = vmatprep.subr.mxu0 0.0
      %1732 = vmatpush1.msra.mxu0 %v1692
      %1733 = vmatprep.subr.mxu0 0.0
      %1734 = vmatpush1.msra.mxu0 %v1693
      %1735 = vmatprep.subr.mxu0 0.0
      %1736 = vmatpush1.msra.mxu0 %v1694
      %1737 = vmatprep.subr.mxu0 0.0
      %1738 = vmatpush1.msra.mxu0 %v1695
      %1739 = vmatprep.subr.mxu0 0.0
      %1740 = vmatpush1.msra.mxu0 %v1696
      %1741 = vmatprep.subr.mxu0 0.0
      %1742 = vmatpush1.msra.mxu0 %v1697
      %1743 = vmatprep.subr.mxu0 0.0
      %1744 = vmatpush1.msra.mxu0 %v1698
      %1745 = vmatprep.subr.mxu0 0.0
      %1746 = vmatpush1.msra.mxu0 %v1699
      %1747 = vmatprep.subr.mxu0 0.0
      %1748 = vmatpush1.msra.mxu0 %v1700
      %1749 = vmatprep.subr.mxu0 0.0
      %1750 = vmatpush1.msra.mxu0 %v1701
      %1751 = vmatprep.subr.mxu0 0.0
      %1752 = vmatpush1.msra.mxu0 %v1702
      %1753 = vmatprep.subr.mxu0 0.0
      %1754 = vmatpush1.msra.mxu0 %v1703
      %1755 = vmatprep.subr.mxu0 0.0
      %1756 = vmatpush1.msra.mxu0 %v1704
      %1757 = vmatprep.subr.mxu0 0.0
      %1758 = vmatpush1.msra.mxu0 %v1705
      %1759 = vmatprep.subr.mxu0 0.0
      %1760 = vmatpush1.msra.mxu0 %v1706
      %1761 = vmatprep.subr.mxu0 0.0
      %1762 = vmatpush1.msra.mxu0 %v1707
      %1763 = vmatprep.subr.mxu0 0.0
      %1764 = vmatpush1.msra.mxu0 %v1708
      %1765 = vmatprep.subr.mxu0 0.0
      %1766 = vmatpush1.msra.mxu0 %v1709
      %1767 = vmatprep.subr.mxu0 0.0
      %1768 = vmatpush1.msra.mxu0 %v1710
      %1769 = vmatprep.subr.mxu0 0.0
      %1770 = vmatpush1.msra.mxu0 %v1711
      %1771 = vmatprep.subr.mxu0 0.0
      %1772 = vmatpush1.msra.mxu0 %v1712
      %1773 = vmatprep.subr.mxu0 0.0
      %1774 = vmatpush1.msra.mxu0 %v1713
      %1775 = vmatprep.subr.mxu0 0.0
      %1776 = vmatpush1.msra.mxu0 %v1714
      %1777 = vmatprep.subr.mxu0 0.0
      %1778 = vmatpush1.msra.mxu0 %v1715
      %1779 = vmatprep.subr.mxu0 0.0
      %1780 = vmatpush1.msra.mxu0 %v1716
      %1781 = vmatprep.mubr.f32.mxu0 %v1684
      %1782 = vmatmul.mubr.f32.gmra.mrb[0].mxu0 %v1683
      %v1783 = vpop.f32.mrb[0].mxu0
      %v1784 = vadd.f32 0.0, %v1783
      %v1785 = vpop.f32.mrb[0].mxu0
      %1786 = vdwg.mxu0
      %v1787 = vld [vmem:[%s774] sm:$0xff]
      %v1788 = vld [vmem:[%s774 + $0x8] sm:$0xff]
      %v1789 = vld [vmem:[%s774 + $0x10] sm:$0xff]
      %v1790 = vld [vmem:[%s774 + $0x18] sm:$0xff]
      %v1792 = vsel %vm977, %v1784, 0
      %1794 = vmatprep.subr.mxu0 0.0
      %1795 = vmatpush1.msra.mxu0 %v1787
      %1796 = vmatprep.subr.mxu0 0.0
      %1797 = vmatpush1.msra.mxu0 %v1788
      %1798 = vmatprep.subr.mxu0 0.0
      %1799 = vmatpush1.msra.mxu0 %v1789
      %1800 = vmatprep.subr.mxu0 0.0
      %1801 = vmatpush1.msra.mxu0 %v1790
      %1802 = vmatprep.subr.mxu0 0.0
      %1803 = vmatpush1.msra.mxu0 0.0
      %1804 = vmatprep.subr.mxu0 0.0
      %1805 = vmatpush1.msra.mxu0 0.0
      %1806 = vmatprep.subr.mxu0 0.0
      %1807 = vmatpush1.msra.mxu0 0.0
      %1808 = vmatprep.subr.mxu0 0.0
      %1809 = vmatpush1.msra.mxu0 0.0
      %1810 = vmatprep.subr.mxu0 0.0
      %1811 = vmatpush1.msra.mxu0 0.0
      %1812 = vmatprep.subr.mxu0 0.0
      %1813 = vmatpush1.msra.mxu0 0.0
      %1814 = vmatprep.subr.mxu0 0.0
      %1815 = vmatpush1.msra.mxu0 0.0
      %1816 = vmatprep.subr.mxu0 0.0
      %1817 = vmatpush1.msra.mxu0 0.0
      %1818 = vmatprep.subr.mxu0 0.0
      %1819 = vmatpush1.msra.mxu0 0.0
      %1820 = vmatprep.subr.mxu0 0.0
      %1821 = vmatpush1.msra.mxu0 0.0
      %1822 = vmatprep.subr.mxu0 0.0
      %1823 = vmatpush1.msra.mxu0 0.0
      %1824 = vmatprep.subr.mxu0 0.0
      %1825 = vmatpush1.msra.mxu0 0.0
      %1826 = vmatprep.subr.mxu0 0.0
      %1827 = vmatpush1.msra.mxu0 0.0
      %1828 = vmatprep.subr.mxu0 0.0
      %1829 = vmatpush1.msra.mxu0 0.0
      %1830 = vmatprep.subr.mxu0 0.0
      %1831 = vmatpush1.msra.mxu0 0.0
      %1832 = vmatprep.subr.mxu0 0.0
      %1833 = vmatpush1.msra.mxu0 0.0
      %1834 = vmatprep.subr.mxu0 0.0
      %1835 = vmatpush1.msra.mxu0 0.0
      %1836 = vmatprep.subr.mxu0 0.0
      %1837 = vmatpush1.msra.mxu0 0.0
      %1838 = vmatprep.subr.mxu0 0.0
      %1839 = vmatpush1.msra.mxu0 0.0
      %1840 = vmatprep.subr.mxu0 0.0
      %1841 = vmatpush1.msra.mxu0 0.0
      %1842 = vmatprep.subr.mxu0 0.0
      %1843 = vmatpush1.msra.mxu0 0.0
      %1844 = vmatprep.subr.mxu0 0.0
      %1845 = vmatpush1.msra.mxu0 0.0
      %1846 = vmatprep.subr.mxu0 0.0
      %1847 = vmatpush1.msra.mxu0 0.0
      %1848 = vmatprep.subr.mxu0 0.0
      %1849 = vmatpush1.msra.mxu0 0.0
      %1850 = vmatprep.subr.mxu0 0.0
      %1851 = vmatpush1.msra.mxu0 0.0
      %1852 = vmatprep.subr.mxu0 0.0
      %1853 = vmatpush1.msra.mxu0 0.0
      %1854 = vmatprep.subr.mxu0 0.0
      %1855 = vmatpush1.msra.mxu0 0.0
      %1856 = vmatprep.subr.mxu0 0.0
      %1857 = vmatpush1.msra.mxu0 0.0
      %1858 = vmatprep.mubr.f32.mxu0 0.0
      %1859 = vmatmul.mubr.f32.gmra.mrb[0].mxu0 %v1792
      %v1860 = vpop.f32.mrb[0].mxu0
      %v1861 = vadd.f32 0.0, %v1860
      %v1862 = vpop.f32.mrb[0].mxu0
      %1863 = vdwg.mxu0
      %v1864 = vstv %s1504
      %v1865 = vmul.f32 %v1864, %v1861
      %v1866 = vld [vmem:[%s777] sm:$0x1]
      %v1868 = vlaneseq
      %v1869 = vshrl.u32 %v1868, 7
      %v1870 = vsub.s32 0, %v1869
      %v1871 = vrot.slane %v1866, %v1870
      %v1873 = vadd.f32 %v1865, %v1871
      %v1874 = vld [vmem:[#allocation2] sm:$0xff]
      %v1875 = vadd.f32 %v1874, %v1873
      %1876 = vst [vmem:[#allocation2] sm:$0xff] %v1875
      %v1877 = vld [vmem:[#allocation2] sm:$0xff]
      %1878 = vst [vmem:[%s786] sm:$0xff] %v1877
      %v1879 = vld [vmem:[#allocation3] sm:$0xff]
      %v1880 = vld [vmem:[%s782] sm:$0xff]
      %v1881 = vld [vmem:[%s782 + $0x8] sm:$0xff]
      %v1882 = vld [vmem:[%s782 + $0x10] sm:$0xff]
      %v1883 = vld [vmem:[%s782 + $0x18] sm:$0xff]
      %v1884 = vld [vmem:[%s782 + $0x20] sm:$0xff]
      %v1885 = vld [vmem:[%s782 + $0x28] sm:$0xff]
      %v1886 = vld [vmem:[%s782 + $0x30] sm:$0xff]
      %v1887 = vld [vmem:[%s782 + $0x38] sm:$0xff]
      %v1888 = vld [vmem:[%s782 + $0x40] sm:$0xff]
      %v1889 = vld [vmem:[%s782 + $0x48] sm:$0xff]
      %v1890 = vld [vmem:[%s782 + $0x50] sm:$0xff]
      %v1891 = vld [vmem:[%s782 + $0x58] sm:$0xff]
      %v1892 = vld [vmem:[%s782 + $0x60] sm:$0xff]
      %v1893 = vld [vmem:[%s782 + $0x68] sm:$0xff]
      %v1894 = vld [vmem:[%s782 + $0x70] sm:$0xff]
      %v1895 = vld [vmem:[%s782 + $0x78] sm:$0xff]
      %1896 = vmatprep.subr.mxu0 0.0
      %1897 = vmatpush1.msra.mxu0 %v1880
      %1898 = vmatprep.subr.mxu0 0.0
      %1899 = vmatpush1.msra.mxu0 %v1881
      %1900 = vmatprep.subr.mxu0 0.0
      %1901 = vmatpush1.msra.mxu0 %v1882
      %1902 = vmatprep.subr.mxu0 0.0
      %1903 = vmatpush1.msra.mxu0 %v1883
      %1904 = vmatprep.subr.mxu0 0.0
      %1905 = vmatpush1.msra.mxu0 %v1884
      %1906 = vmatprep.subr.mxu0 0.0
      %1907 = vmatpush1.msra.mxu0 %v1885
      %1908 = vmatprep.subr.mxu0 0.0
      %1909 = vmatpush1.msra.mxu0 %v1886
      %1910 = vmatprep.subr.mxu0 0.0
      %1911 = vmatpush1.msra.mxu0 %v1887
      %1912 = vmatprep.subr.mxu0 0.0
      %1913 = vmatpush1.msra.mxu0 %v1888
      %1914 = vmatprep.subr.mxu0 0.0
      %1915 = vmatpush1.msra.mxu0 %v1889
      %1916 = vmatprep.subr.mxu0 0.0
      %1917 = vmatpush1.msra.mxu0 %v1890
      %1918 = vmatprep.subr.mxu0 0.0
      %1919 = vmatpush1.msra.mxu0 %v1891
      %1920 = vmatprep.subr.mxu0 0.0
      %1921 = vmatpush1.msra.mxu0 %v1892
      %1922 = vmatprep.subr.mxu0 0.0
      %1923 = vmatpush1.msra.mxu0 %v1893
      %1924 = vmatprep.subr.mxu0 0.0
      %1925 = vmatpush1.msra.mxu0 %v1894
      %1926 = vmatprep.subr.mxu0 0.0
      %1927 = vmatpush1.msra.mxu0 %v1895
      %1928 = vmatprep.subr.mxu0 0.0
      %1929 = vmatpush1.msra.mxu0 0.0
      %1930 = vmatprep.subr.mxu0 0.0
      %1931 = vmatpush1.msra.mxu0 0.0
      %1932 = vmatprep.subr.mxu0 0.0
      %1933 = vmatpush1.msra.mxu0 0.0
      %1934 = vmatprep.subr.mxu0 0.0
      %1935 = vmatpush1.msra.mxu0 0.0
      %1936 = vmatprep.subr.mxu0 0.0
      %1937 = vmatpush1.msra.mxu0 0.0
      %1938 = vmatprep.subr.mxu0 0.0
      %1939 = vmatpush1.msra.mxu0 0.0
      %1940 = vmatprep.subr.mxu0 0.0
      %1941 = vmatpush1.msra.mxu0 0.0
      %1942 = vmatprep.subr.mxu0 0.0
      %1943 = vmatpush1.msra.mxu0 0.0
      %1944 = vmatprep.subr.mxu0 0.0
      %1945 = vmatpush1.msra.mxu0 0.0
      %1946 = vmatprep.subr.mxu0 0.0
      %1947 = vmatpush1.msra.mxu0 0.0
      %1948 = vmatprep.subr.mxu0 0.0
      %1949 = vmatpush1.msra.mxu0 0.0
      %1950 = vmatprep.subr.mxu0 0.0
      %1951 = vmatpush1.msra.mxu0 0.0
      %1952 = vmatprep.subr.mxu0 0.0
      %1953 = vmatpush1.msra.mxu0 0.0
      %1954 = vmatprep.subr.mxu0 0.0
      %1955 = vmatpush1.msra.mxu0 0.0
      %1956 = vmatprep.subr.mxu0 0.0
      %1957 = vmatpush1.msra.mxu0 0.0
      %1958 = vmatprep.subr.mxu0 0.0
      %1959 = vmatpush1.msra.mxu0 0.0
      %1960 = vmatprep.mubr.f32.mxu0 0.0
      %1961 = vmatmul.mubr.f32.gmra.mrb[0].mxu0 %v1873
      %v1962 = vpop.f32.mrb[0].mxu0
      %v1963 = vadd.f32 0.0, %v1962
      %v1964 = vpop.f32.mrb[0].mxu0
      %1965 = vdwg.mxu0
      %v1966 = vadd.f32 %v1879, %v1963
      %1967 = vst.msk [vmem:[#allocation3] sm:$0xff] %vm813, %v1966
      %p1968 = scmp.lt.s32.totalorder %s29, 1
      %s1969 = scalar_select %p1968, %s29, 1
      %s1970 = smul.addr %s1969, 8
      %s1971 = scalar_lea.vmem %s18, %s1970
      // Predicated region
      $region97: #{dboostree_forward.1} parent=91 // pred_check
        %p1972 = pneg %p490
      $region98: #{dboostree_forward.1} parent=91 // pred_check_branch
        %1974 = sbr.rel (%p1972) target = $region100
      $region99: #{dboostree_forward.1} parent=91 // pred_region
        _
      $region100: #{dboostree_forward.1} parent=91 // pred_fallthru
        _
    $region92: #{dboostree_forward.1} parent=5 // pred_fallthru
      _
    %p1975 = scmp.le.s32.totalorder 2, %s24
    // Predicated region
    $region101: #{dboostree_forward.1} parent=5 // pred_check
      %p1976 = pneg %p1975
    $region102: #{dboostree_forward.1} parent=5 // pred_check_branch
      %1978 = sbr.rel (%p1976) target = $region104
    $region103: #{dboostree_forward.1} parent=5 // pred_region
      %s1979 = ssub.s32 %s24, 2
      // Predicated region
      $region105: #{dboostree_forward.1} parent=103 // pred_check
        %p1980 = pneg %p496
      $region106: #{dboostree_forward.1} parent=103 // pred_check_branch
        %1982 = sbr.rel (%p1980) target = $region108
      $region107: #{dboostree_forward.1} parent=103 // pred_region
        %p1983 = scmp.lt.s32.totalorder %s30, 1
        %s1984 = scalar_select %p1983, %s30, 1
        %s1985 = smul.addr %s1984, 8
        %s1986 = scalar_lea.vmem %s18, %s1985
      $region108: #{dboostree_forward.1} parent=103 // pred_fallthru
        _
    $region104: #{dboostree_forward.1} parent=5 // pred_fallthru
      _
  $region6: #{dboostree_forward.1} parent=0 // loop_footer
    %s28 = sadd.s32 1, %s24
  $region7: #{dboostree_forward.1} parent=0 // loop_footer_branch
    %23 = sbr.rel target = $region3
  $region8: #{dboostree_forward.1} parent=0 // loop_exit
    _

</llo_original>
